<compile_context>
chip_gen: v5e
topology: v5e:2x2
jax: 0.10.0
libtpu: 0.0.40
codegen_flags: <defaults>
</compile_context>

<pallas_src>
import functools

import jax
import jax.numpy as jnp
from jax.experimental import pallas as pl
from jax.experimental.pallas import tpu as pltpu


def sofanet_kernel(xf_ref, wihf_ref, bih_ref, whh_ref, bhh_ref,
                   w1_ref, b1_ref, w2_ref, b2_ref,
                   wf1h_ref, wf1o_ref, bf1_ref, wf2_ref, bf2_ref,
                   gcat_ref, out_ref, *, T, H):
    f32 = jnp.float32
    H4 = 4 * H               # fused hidden layout: [h1 | h2 | h3 | h4]
    G12 = 3 * H4             # gate-major gate layout: [r(4H) | z(4H) | n(4H)]

    xf = xf_ref[...].astype(f32)                               # (TB, T*D)
    TB = xf.shape[0]

    # --- hoisted input-to-hidden projection (1 matmul for all GRUs, all t) --
    # Delta features are folded into wihf, so gi_all[:, t*G12:(t+1)*G12] equals
    # [x_t, x_t - x_{t-1}] @ W_ih for every GRU (with delta_0 = 0).
    gi_all = jnp.dot(xf, wihf_ref[...], preferred_element_type=f32)  # (TB, T*G12)

    bih = bih_ref[...]
    bhh = bhh_ref[...]
    whh = whh_ref[...]                                         # (4H, 12H) block-diag

    # --- fused GRU recurrence (4 GRUs as one block-diagonal GRU) ------------
    h = jnp.zeros((TB, H4), f32)
    for t in range(T):                                         # T = 6, static unroll
        gi = gi_all[:, t * G12:(t + 1) * G12] + bih            # (TB, 12H)
        gh = jnp.dot(h, whh, preferred_element_type=f32) + bhh
        r = jax.nn.sigmoid(gi[:, :H4] + gh[:, :H4])
        z = jax.nn.sigmoid(gi[:, H4:2 * H4] + gh[:, H4:2 * H4])
        n = jnp.tanh(gi[:, 2 * H4:] + r * gh[:, 2 * H4:])
        h = (1.0 - z) * n + z * h

    # --- 4 head MLPs fused via block-diagonal weights ------------------------
    hid = jnp.maximum(
        jnp.dot(h, w1_ref[...], preferred_element_type=f32) + b1_ref[...], 0.0)
    heads = jnp.dot(hid, w2_ref[...], preferred_element_type=f32) + b2_ref[...]  # (TB, 11)

    # gru_out embedding = [h1..h4 | o1 o2 o3 o4], written via slice stores.
    gcat_ref[:, :H4] = h.astype(gcat_ref.dtype)
    gcat_ref[:, H4:] = heads.astype(gcat_ref.dtype)

    # --- final MLP (wf1 pre-split so the big K stays lane-aligned at 128) ----
    hidf = jnp.maximum(
        jnp.dot(h, wf1h_ref[...], preferred_element_type=f32)
        + jnp.dot(heads, wf1o_ref[...], preferred_element_type=f32)
        + bf1_ref[...], 0.0)
    out_ref[...] = (jnp.dot(hidf, wf2_ref[...], preferred_element_type=f32)
                    + bf2_ref[...]).astype(out_ref.dtype)


def init_params(key, input_dim, hidden_dim, output_dim=2):
    """Raw (PyTorch-layout, pre-transposed) parameters."""
    D, H = input_dim, hidden_dim
    H2 = H // 2
    ks = jax.random.split(key, 14)

    def u(k, shape, s):
        return jax.random.uniform(k, shape, jnp.float32, -s, s)

    sH = H ** -0.5
    sH2 = H2 ** -0.5
    sF1 = (4 * H + 11) ** -0.5
    sF2 = (2 * H) ** -0.5
    return dict(
        wih=u(ks[0], (4, 2 * D, 3 * H), sH),   # GRU W_ih^T, stacked over 4 GRUs
        whh=u(ks[1], (4, H, 3 * H), sH),       # GRU W_hh^T
        bih=u(ks[2], (4, 1, 3 * H), sH),
        bhh=u(ks[3], (4, 1, 3 * H), sH),
        w1=u(ks[4], (4, H, H2), sH),           # first linear of each head
        b1=u(ks[5], (4, 1, H2), sH),
        w2a=u(ks[6], (3, H2, 3), sH2),         # heads 1-3 second linear (out=3)
        b2a=u(ks[7], (3, 1, 3), sH2),
        w2b=u(ks[8], (H2, 2), sH2),            # head 4 second linear (out=2)
        b2b=u(ks[9], (1, 2), sH2),
        wf1=u(ks[10], (4 * H + 11, 2 * H), sF1),
        bf1=u(ks[11], (1, 2 * H), sF1),
        wf2=u(ks[12], (2 * H, output_dim), sF2),
        bf2=u(ks[13], (1, output_dim), sF2),
    )


def prepare_params(p, input_dim, hidden_dim, seq_len=6):
    """Build the fused / block-diagonal weights consumed by the kernel (once)."""
    D, H, T = input_dim, hidden_dim, seq_len
    H2, H4 = H // 2, 4 * hidden_dim
    G12 = 3 * H4

    wih, whh, bih, bhh = p["wih"], p["whh"], p["bih"], p["bhh"]

    # Gate-major (r|z|n), GRU-minor column layout.
    wx = jnp.zeros((D, G12), jnp.float32)          # x part of W_ih
    wd = jnp.zeros((D, G12), jnp.float32)          # delta part of W_ih
    whh_bd = jnp.zeros((H4, G12), jnp.float32)     # block-diagonal W_hh
    bih_c = jnp.zeros((1, G12), jnp.float32)
    bhh_c = jnp.zeros((1, G12), jnp.float32)
    for k in range(4):
        for g in range(3):                          # g: 0=r, 1=z, 2=n
            col = slice(g * H4 + k * H, g * H4 + (k + 1) * H)
            src = slice(g * H, (g + 1) * H)
            wx = wx.at[:, col].set(wih[k, :D, src])
            wd = wd.at[:, col].set(wih[k, D:, src])
            whh_bd = whh_bd.at[k * H:(k + 1) * H, col].set(whh[k, :, src])
            bih_c = bih_c.at[:, col].set(bih[k, :, src])
            bhh_c = bhh_c.at[:, col].set(bhh[k, :, src])

    # Fold the delta feature into one (T*D, T*12H) time-block weight:
    #   gi_t = x_t @ Wx + (x_t - x_{t-1}) @ Wd   (delta_0 = 0)
    wihf = jnp.zeros((T * D, T * G12), jnp.float32)
    for t in range(T):
        blk = slice(t * G12, (t + 1) * G12)
        if t == 0:
            wihf = wihf.at[0:D, blk].set(wx)
        else:
            wihf = wihf.at[t * D:(t + 1) * D, blk].set(wx + wd)
            wihf = wihf.at[(t - 1) * D:t * D, blk].set(-wd)

    # Head MLPs as block-diagonal weights -> (B, 11) slab [o1|o2|o3|o4].
    w1_bd = jnp.zeros((H4, 4 * H2), jnp.float32)
    b1_c = jnp.zeros((1, 4 * H2), jnp.float32)
    w2_bd = jnp.zeros((4 * H2, 11), jnp.float32)
    b2_c = jnp.zeros((1, 11), jnp.float32)
    offs, widths = [0, 3, 6, 9], [3, 3, 3, 2]
    for k in range(4):
        w1_bd = w1_bd.at[k * H:(k + 1) * H, k * H2:(k + 1) * H2].set(p["w1"][k])
        b1_c = b1_c.at[:, k * H2:(k + 1) * H2].set(p["b1"][k])
        w2k = p["w2a"][k] if k < 3 else p["w2b"]
        b2k = p["b2a"][k] if k < 3 else p["b2b"]
        w2_bd = w2_bd.at[k * H2:(k + 1) * H2, offs[k]:offs[k] + widths[k]].set(w2k)
        b2_c = b2_c.at[:, offs[k]:offs[k] + widths[k]].set(b2k)

    return dict(
        wihf=wihf, bih=bih_c, whh=whh_bd, bhh=bhh_c,
        w1=w1_bd, b1=b1_c, w2=w2_bd, b2=b2_c,
        wf1h=p["wf1"][:H4], wf1o=p["wf1"][H4:], bf1=p["bf1"],
        wf2=p["wf2"], bf2=p["bf2"],
    )


_WEIGHT_NAMES = ["wihf", "bih", "whh", "bhh", "w1", "b1", "w2", "b2",
                 "wf1h", "wf1o", "bf1", "wf2", "bf2"]


def sofanet_forward(x, fp):
    B, T, D = x.shape
    H4, G12 = fp["whh"].shape
    H = H4 // 4
    out_dim = fp["wf2"].shape[1]
    E = H4 + 11                                    # gru_out width (4H + 11)

    xf = x.reshape(B, T * D).astype(jnp.float32)   # free wrapper-side reshape

    # Batch tile: multiple of 8 for big batches, full batch otherwise.
    TB = 256 if (B % 256 == 0) else B
    grid = (B // TB,)

    def batch_spec(cols):
        return pl.BlockSpec((TB, cols), lambda i: (i, 0))

    def resident(shape):
        nd = len(shape)
        return pl.BlockSpec(shape, lambda i: (0,) * nd)

    in_specs = [batch_spec(T * D)] + [resident(fp[n].shape) for n in _WEIGHT_NAMES]
    out_specs = (batch_spec(E), batch_spec(out_dim))
    out_shape = (jax.ShapeDtypeStruct((B, E), jnp.float32),
                 jax.ShapeDtypeStruct((B, out_dim), jnp.float32))

    kernel = functools.partial(sofanet_kernel, T=T, H=H)
    gcat, out = pl.pallas_call(
        kernel,
        grid=grid,
        in_specs=in_specs,
        out_specs=out_specs,
        out_shape=out_shape,
        compiler_params=pltpu.CompilerParams(dimension_semantics=("parallel",)),
    )(xf, *[fp[n] for n in _WEIGHT_NAMES])

    # o1..o4 are lane-dense slices of gru_out; sliced in JAX (no masked stores).
    o1 = gcat[:, H4:H4 + 3]
    o2 = gcat[:, H4 + 3:H4 + 6]
    o3 = gcat[:, H4 + 6:H4 + 9]
    o4 = gcat[:, H4 + 9:H4 + 11]
    return [o1, o2, o3, o4, gcat, out]


def sofanet_ref(x, p):
    """Pure-JAX reference matching the PyTorch forward (for verification)."""
    hp = jax.lax.Precision.HIGHEST
    B, T, D = x.shape
    H = p["whh"].shape[1]
    delta = x[:, 1:, :] - x[:, :-1, :]
    delta = jnp.concatenate([jnp.zeros((B, 1, D), x.dtype), delta], axis=1)
    xc = jnp.concatenate([x, delta], axis=2)
    hs = []
    for k in range(4):
        h = jnp.zeros((B, H), jnp.float32)
        for t in range(T):
            xt = xc[:, t, :]
            gi = jnp.dot(xt, p["wih"][k], precision=hp) + p["bih"][k]
            gh = jnp.dot(h, p["whh"][k], precision=hp) + p["bhh"][k]
            r = jax.nn.sigmoid(gi[:, :H] + gh[:, :H])
            z = jax.nn.sigmoid(gi[:, H:2 * H] + gh[:, H:2 * H])
            n = jnp.tanh(gi[:, 2 * H:] + r * gh[:, 2 * H:])
            h = (1.0 - z) * n + z * h
        hs.append(h)
    outs = []
    for k in range(3):
        hid = jax.nn.relu(jnp.dot(hs[k], p["w1"][k], precision=hp) + p["b1"][k])
        outs.append(jnp.dot(hid, p["w2a"][k], precision=hp) + p["b2a"][k])
    hid4 = jax.nn.relu(jnp.dot(hs[3], p["w1"][3], precision=hp) + p["b1"][3])
    o4 = jnp.dot(hid4, p["w2b"], precision=hp) + p["b2b"]
    gcat = jnp.concatenate(hs + outs + [o4], axis=1)
    hidf = jax.nn.relu(jnp.dot(gcat, p["wf1"], precision=hp) + p["bf1"])
    out = jnp.dot(hidf, p["wf2"], precision=hp) + p["bf2"]
    return [outs[0], outs[1], outs[2], o4, gcat, out]


if __name__ == "__main__":
    # Shapes implied by the module: seq length must be 6 (x[:,1:6]-x[:,0:5]).
    B, T, D, H = 2, 6, 4, 32
    key = jax.random.PRNGKey(0)
    kx, kp = jax.random.split(key)
    x = jax.random.normal(kx, (B, T, D), jnp.float32)

    raw = init_params(kp, D, H, output_dim=2)
    fused = prepare_params(raw, D, H, seq_len=T)    # built once, outside kernel

    outs = sofanet_forward(x, fused)
    outs = jax.block_until_ready(outs)

    refs = sofanet_ref(x, raw)
    names = ["output1", "output2", "output3", "output4", "gru_out", "output"]
    for name, o, r in zip(names, outs, refs):
        assert o.shape == r.shape, (name, o.shape, r.shape)
        assert bool(jnp.all(jnp.isfinite(o))), name
        err = float(jnp.max(jnp.abs(o - r)))
        assert bool(jnp.allclose(o, r, atol=5e-3, rtol=5e-3)), (name, err)

    print("KERNEL_OK")
</pallas_src>

<mosaic_0001>
module attributes {stable_mosaic.version = 11 : i64} {
  func.func @sofanet_kernel(%arg0: i32, %arg1: memref<2x24xf32, #tpu.memory_space<vmem>>, %arg2: memref<24x2304xf32, #tpu.memory_space<vmem>>, %arg3: memref<1x384xf32, #tpu.memory_space<vmem>>, %arg4: memref<128x384xf32, #tpu.memory_space<vmem>>, %arg5: memref<1x384xf32, #tpu.memory_space<vmem>>, %arg6: memref<128x64xf32, #tpu.memory_space<vmem>>, %arg7: memref<1x64xf32, #tpu.memory_space<vmem>>, %arg8: memref<64x11xf32, #tpu.memory_space<vmem>>, %arg9: memref<1x11xf32, #tpu.memory_space<vmem>>, %arg10: memref<128x64xf32, #tpu.memory_space<vmem>>, %arg11: memref<11x64xf32, #tpu.memory_space<vmem>>, %arg12: memref<1x64xf32, #tpu.memory_space<vmem>>, %arg13: memref<64x2xf32, #tpu.memory_space<vmem>>, %arg14: memref<1x2xf32, #tpu.memory_space<vmem>>, %arg15: memref<2x139xf32, #tpu.memory_space<vmem>>, %arg16: memref<2x2xf32, #tpu.memory_space<vmem>>) attributes {dimension_semantics = [#tpu.dimension_semantics<parallel>], iteration_bounds = array<i64: 1>, scalar_prefetch = 0 : i64, scratch_operands = 0 : i64, tpu.core_type = #tpu.core_type<tc>, window_params = [{transform_indices = @transform_0, window_bounds = array<i64: 2, 24>}, {pipeline_mode = #tpu.pipeline_mode<synchronous>, transform_indices = @transform_1, window_bounds = array<i64: 24, 2304>}, {pipeline_mode = #tpu.pipeline_mode<synchronous>, transform_indices = @transform_2, window_bounds = array<i64: 1, 384>}, {pipeline_mode = #tpu.pipeline_mode<synchronous>, transform_indices = @transform_3, window_bounds = array<i64: 128, 384>}, {pipeline_mode = #tpu.pipeline_mode<synchronous>, transform_indices = @transform_4, window_bounds = array<i64: 1, 384>}, {pipeline_mode = #tpu.pipeline_mode<synchronous>, transform_indices = @transform_5, window_bounds = array<i64: 128, 64>}, {pipeline_mode = #tpu.pipeline_mode<synchronous>, transform_indices = @transform_6, window_bounds = array<i64: 1, 64>}, {pipeline_mode = #tpu.pipeline_mode<synchronous>, transform_indices = @transform_7, window_bounds = array<i64: 64, 11>}, {pipeline_mode = #tpu.pipeline_mode<synchronous>, transform_indices = @transform_8, window_bounds = array<i64: 1, 11>}, {pipeline_mode = #tpu.pipeline_mode<synchronous>, transform_indices = @transform_9, window_bounds = array<i64: 128, 64>}, {pipeline_mode = #tpu.pipeline_mode<synchronous>, transform_indices = @transform_10, window_bounds = array<i64: 11, 64>}, {pipeline_mode = #tpu.pipeline_mode<synchronous>, transform_indices = @transform_11, window_bounds = array<i64: 1, 64>}, {pipeline_mode = #tpu.pipeline_mode<synchronous>, transform_indices = @transform_12, window_bounds = array<i64: 64, 2>}, {pipeline_mode = #tpu.pipeline_mode<synchronous>, transform_indices = @transform_13, window_bounds = array<i64: 1, 2>}, {transform_indices = @transform_14, window_bounds = array<i64: 2, 139>}, {transform_indices = @transform_15, window_bounds = array<i64: 2, 2>}]} {
    %c0 = arith.constant 0 : index
    %c0_0 = arith.constant 0 : index
    %0 = vector.load %arg1[%c0, %c0_0] : memref<2x24xf32, #tpu.memory_space<vmem>>, vector<2x24xf32>
    %c0_1 = arith.constant 0 : index
    %c0_2 = arith.constant 0 : index
    %1 = vector.load %arg2[%c0_1, %c0_2] : memref<24x2304xf32, #tpu.memory_space<vmem>>, vector<24x2304xf32>
    %cst = arith.constant dense<0.000000e+00> : vector<2x2304xf32>
    %2 = tpu.matmul %0, %1, %cst {dimension_numbers = #tpu.dot_dimension_numbers<[1], [0], [0], [1], [0, 0, 1, 1], [], []>} : vector<2x24xf32>, vector<24x2304xf32>, vector<2x2304xf32> -> vector<2x2304xf32>
    %c0_3 = arith.constant 0 : index
    %c0_4 = arith.constant 0 : index
    %3 = vector.load %arg3[%c0_3, %c0_4] : memref<1x384xf32, #tpu.memory_space<vmem>>, vector<1x384xf32>
    %c0_5 = arith.constant 0 : index
    %c0_6 = arith.constant 0 : index
    %4 = vector.load %arg5[%c0_5, %c0_6] : memref<1x384xf32, #tpu.memory_space<vmem>>, vector<1x384xf32>
    %c0_7 = arith.constant 0 : index
    %c0_8 = arith.constant 0 : index
    %5 = vector.load %arg4[%c0_7, %c0_8] : memref<128x384xf32, #tpu.memory_space<vmem>>, vector<128x384xf32>
    %cst_9 = arith.constant 0.000000e+00 : f32
    %6 = vector.broadcast %cst_9 : f32 to vector<2x128xf32>
    %7 = vector.extract_strided_slice %2 {offsets = [0, 0], sizes = [2, 384], strides = [1, 1]} : vector<2x2304xf32> to vector<2x384xf32>
    %8 = vector.broadcast %3 : vector<1x384xf32> to vector<2x384xf32>
    %9 = arith.addf %7, %8 : vector<2x384xf32>
    %cst_10 = arith.constant dense<0.000000e+00> : vector<2x384xf32>
    %10 = tpu.matmul %6, %5, %cst_10 {dimension_numbers = #tpu.dot_dimension_numbers<[1], [0], [0], [1], [0, 0, 1, 1], [], []>} : vector<2x128xf32>, vector<128x384xf32>, vector<2x384xf32> -> vector<2x384xf32>
    %11 = vector.broadcast %4 : vector<1x384xf32> to vector<2x384xf32>
    %12 = arith.addf %10, %11 : vector<2x384xf32>
    %13 = vector.extract_strided_slice %9 {offsets = [0, 0], sizes = [2, 128], strides = [1, 1]} : vector<2x384xf32> to vector<2x128xf32>
    %14 = vector.extract_strided_slice %12 {offsets = [0, 0], sizes = [2, 128], strides = [1, 1]} : vector<2x384xf32> to vector<2x128xf32>
    %15 = arith.addf %13, %14 : vector<2x128xf32>
    %16 = arith.negf %15 : vector<2x128xf32>
    %17 = math.exp %16 : vector<2x128xf32>
    %cst_11 = arith.constant 1.000000e+00 : f32
    %18 = vector.broadcast %cst_11 : f32 to vector<2x128xf32>
    %19 = arith.addf %18, %17 : vector<2x128xf32>
    %20 = arith.divf %18, %19 : vector<2x128xf32>
    %21 = vector.extract_strided_slice %9 {offsets = [0, 128], sizes = [2, 128], strides = [1, 1]} : vector<2x384xf32> to vector<2x128xf32>
    %22 = vector.extract_strided_slice %12 {offsets = [0, 128], sizes = [2, 128], strides = [1, 1]} : vector<2x384xf32> to vector<2x128xf32>
    %23 = arith.addf %21, %22 : vector<2x128xf32>
    %24 = arith.negf %23 : vector<2x128xf32>
    %25 = math.exp %24 : vector<2x128xf32>
    %cst_12 = arith.constant 1.000000e+00 : f32
    %26 = vector.broadcast %cst_12 : f32 to vector<2x128xf32>
    %27 = arith.addf %26, %25 : vector<2x128xf32>
    %28 = arith.divf %26, %27 : vector<2x128xf32>
    %29 = vector.extract_strided_slice %9 {offsets = [0, 256], sizes = [2, 128], strides = [1, 1]} : vector<2x384xf32> to vector<2x128xf32>
    %30 = vector.extract_strided_slice %12 {offsets = [0, 256], sizes = [2, 128], strides = [1, 1]} : vector<2x384xf32> to vector<2x128xf32>
    %31 = arith.mulf %20, %30 : vector<2x128xf32>
    %32 = arith.addf %29, %31 : vector<2x128xf32>
    %33 = math.tanh %32 : vector<2x128xf32>
    %cst_13 = arith.constant 1.000000e+00 : f32
    %34 = vector.broadcast %cst_13 : f32 to vector<2x128xf32>
    %35 = arith.subf %34, %28 : vector<2x128xf32>
    %36 = arith.mulf %35, %33 : vector<2x128xf32>
    %37 = arith.mulf %28, %6 : vector<2x128xf32>
    %38 = arith.addf %36, %37 : vector<2x128xf32>
    %39 = vector.extract_strided_slice %2 {offsets = [0, 384], sizes = [2, 384], strides = [1, 1]} : vector<2x2304xf32> to vector<2x384xf32>
    %40 = vector.broadcast %3 : vector<1x384xf32> to vector<2x384xf32>
    %41 = arith.addf %39, %40 : vector<2x384xf32>
    %cst_14 = arith.constant dense<0.000000e+00> : vector<2x384xf32>
    %42 = tpu.matmul %38, %5, %cst_14 {dimension_numbers = #tpu.dot_dimension_numbers<[1], [0], [0], [1], [0, 0, 1, 1], [], []>} : vector<2x128xf32>, vector<128x384xf32>, vector<2x384xf32> -> vector<2x384xf32>
    %43 = vector.broadcast %4 : vector<1x384xf32> to vector<2x384xf32>
    %44 = arith.addf %42, %43 : vector<2x384xf32>
    %45 = vector.extract_strided_slice %41 {offsets = [0, 0], sizes = [2, 128], strides = [1, 1]} : vector<2x384xf32> to vector<2x128xf32>
    %46 = vector.extract_strided_slice %44 {offsets = [0, 0], sizes = [2, 128], strides = [1, 1]} : vector<2x384xf32> to vector<2x128xf32>
    %47 = arith.addf %45, %46 : vector<2x128xf32>
    %48 = arith.negf %47 : vector<2x128xf32>
    %49 = math.exp %48 : vector<2x128xf32>
    %cst_15 = arith.constant 1.000000e+00 : f32
    %50 = vector.broadcast %cst_15 : f32 to vector<2x128xf32>
    %51 = arith.addf %50, %49 : vector<2x128xf32>
    %52 = arith.divf %50, %51 : vector<2x128xf32>
    %53 = vector.extract_strided_slice %41 {offsets = [0, 128], sizes = [2, 128], strides = [1, 1]} : vector<2x384xf32> to vector<2x128xf32>
    %54 = vector.extract_strided_slice %44 {offsets = [0, 128], sizes = [2, 128], strides = [1, 1]} : vector<2x384xf32> to vector<2x128xf32>
    %55 = arith.addf %53, %54 : vector<2x128xf32>
    %56 = arith.negf %55 : vector<2x128xf32>
    %57 = math.exp %56 : vector<2x128xf32>
    %cst_16 = arith.constant 1.000000e+00 : f32
    %58 = vector.broadcast %cst_16 : f32 to vector<2x128xf32>
    %59 = arith.addf %58, %57 : vector<2x128xf32>
    %60 = arith.divf %58, %59 : vector<2x128xf32>
    %61 = vector.extract_strided_slice %41 {offsets = [0, 256], sizes = [2, 128], strides = [1, 1]} : vector<2x384xf32> to vector<2x128xf32>
    %62 = vector.extract_strided_slice %44 {offsets = [0, 256], sizes = [2, 128], strides = [1, 1]} : vector<2x384xf32> to vector<2x128xf32>
    %63 = arith.mulf %52, %62 : vector<2x128xf32>
    %64 = arith.addf %61, %63 : vector<2x128xf32>
    %65 = math.tanh %64 : vector<2x128xf32>
    %cst_17 = arith.constant 1.000000e+00 : f32
    %66 = vector.broadcast %cst_17 : f32 to vector<2x128xf32>
    %67 = arith.subf %66, %60 : vector<2x128xf32>
    %68 = arith.mulf %67, %65 : vector<2x128xf32>
    %69 = arith.mulf %60, %38 : vector<2x128xf32>
    %70 = arith.addf %68, %69 : vector<2x128xf32>
    %71 = vector.extract_strided_slice %2 {offsets = [0, 768], sizes = [2, 384], strides = [1, 1]} : vector<2x2304xf32> to vector<2x384xf32>
    %72 = vector.broadcast %3 : vector<1x384xf32> to vector<2x384xf32>
    %73 = arith.addf %71, %72 : vector<2x384xf32>
    %cst_18 = arith.constant dense<0.000000e+00> : vector<2x384xf32>
    %74 = tpu.matmul %70, %5, %cst_18 {dimension_numbers = #tpu.dot_dimension_numbers<[1], [0], [0], [1], [0, 0, 1, 1], [], []>} : vector<2x128xf32>, vector<128x384xf32>, vector<2x384xf32> -> vector<2x384xf32>
    %75 = vector.broadcast %4 : vector<1x384xf32> to vector<2x384xf32>
    %76 = arith.addf %74, %75 : vector<2x384xf32>
    %77 = vector.extract_strided_slice %73 {offsets = [0, 0], sizes = [2, 128], strides = [1, 1]} : vector<2x384xf32> to vector<2x128xf32>
    %78 = vector.extract_strided_slice %76 {offsets = [0, 0], sizes = [2, 128], strides = [1, 1]} : vector<2x384xf32> to vector<2x128xf32>
    %79 = arith.addf %77, %78 : vector<2x128xf32>
    %80 = arith.negf %79 : vector<2x128xf32>
    %81 = math.exp %80 : vector<2x128xf32>
    %cst_19 = arith.constant 1.000000e+00 : f32
    %82 = vector.broadcast %cst_19 : f32 to vector<2x128xf32>
    %83 = arith.addf %82, %81 : vector<2x128xf32>
    %84 = arith.divf %82, %83 : vector<2x128xf32>
    %85 = vector.extract_strided_slice %73 {offsets = [0, 128], sizes = [2, 128], strides = [1, 1]} : vector<2x384xf32> to vector<2x128xf32>
    %86 = vector.extract_strided_slice %76 {offsets = [0, 128], sizes = [2, 128], strides = [1, 1]} : vector<2x384xf32> to vector<2x128xf32>
    %87 = arith.addf %85, %86 : vector<2x128xf32>
    %88 = arith.negf %87 : vector<2x128xf32>
    %89 = math.exp %88 : vector<2x128xf32>
    %cst_20 = arith.constant 1.000000e+00 : f32
    %90 = vector.broadcast %cst_20 : f32 to vector<2x128xf32>
    %91 = arith.addf %90, %89 : vector<2x128xf32>
    %92 = arith.divf %90, %91 : vector<2x128xf32>
    %93 = vector.extract_strided_slice %73 {offsets = [0, 256], sizes = [2, 128], strides = [1, 1]} : vector<2x384xf32> to vector<2x128xf32>
    %94 = vector.extract_strided_slice %76 {offsets = [0, 256], sizes = [2, 128], strides = [1, 1]} : vector<2x384xf32> to vector<2x128xf32>
    %95 = arith.mulf %84, %94 : vector<2x128xf32>
    %96 = arith.addf %93, %95 : vector<2x128xf32>
    %97 = math.tanh %96 : vector<2x128xf32>
    %cst_21 = arith.constant 1.000000e+00 : f32
    %98 = vector.broadcast %cst_21 : f32 to vector<2x128xf32>
    %99 = arith.subf %98, %92 : vector<2x128xf32>
    %100 = arith.mulf %99, %97 : vector<2x128xf32>
    %101 = arith.mulf %92, %70 : vector<2x128xf32>
    %102 = arith.addf %100, %101 : vector<2x128xf32>
    %103 = vector.extract_strided_slice %2 {offsets = [0, 1152], sizes = [2, 384], strides = [1, 1]} : vector<2x2304xf32> to vector<2x384xf32>
    %104 = vector.broadcast %3 : vector<1x384xf32> to vector<2x384xf32>
    %105 = arith.addf %103, %104 : vector<2x384xf32>
    %cst_22 = arith.constant dense<0.000000e+00> : vector<2x384xf32>
    %106 = tpu.matmul %102, %5, %cst_22 {dimension_numbers = #tpu.dot_dimension_numbers<[1], [0], [0], [1], [0, 0, 1, 1], [], []>} : vector<2x128xf32>, vector<128x384xf32>, vector<2x384xf32> -> vector<2x384xf32>
    %107 = vector.broadcast %4 : vector<1x384xf32> to vector<2x384xf32>
    %108 = arith.addf %106, %107 : vector<2x384xf32>
    %109 = vector.extract_strided_slice %105 {offsets = [0, 0], sizes = [2, 128], strides = [1, 1]} : vector<2x384xf32> to vector<2x128xf32>
    %110 = vector.extract_strided_slice %108 {offsets = [0, 0], sizes = [2, 128], strides = [1, 1]} : vector<2x384xf32> to vector<2x128xf32>
    %111 = arith.addf %109, %110 : vector<2x128xf32>
    %112 = arith.negf %111 : vector<2x128xf32>
    %113 = math.exp %112 : vector<2x128xf32>
    %cst_23 = arith.constant 1.000000e+00 : f32
    %114 = vector.broadcast %cst_23 : f32 to vector<2x128xf32>
    %115 = arith.addf %114, %113 : vector<2x128xf32>
    %116 = arith.divf %114, %115 : vector<2x128xf32>
    %117 = vector.extract_strided_slice %105 {offsets = [0, 128], sizes = [2, 128], strides = [1, 1]} : vector<2x384xf32> to vector<2x128xf32>
    %118 = vector.extract_strided_slice %108 {offsets = [0, 128], sizes = [2, 128], strides = [1, 1]} : vector<2x384xf32> to vector<2x128xf32>
    %119 = arith.addf %117, %118 : vector<2x128xf32>
    %120 = arith.negf %119 : vector<2x128xf32>
    %121 = math.exp %120 : vector<2x128xf32>
    %cst_24 = arith.constant 1.000000e+00 : f32
    %122 = vector.broadcast %cst_24 : f32 to vector<2x128xf32>
    %123 = arith.addf %122, %121 : vector<2x128xf32>
    %124 = arith.divf %122, %123 : vector<2x128xf32>
    %125 = vector.extract_strided_slice %105 {offsets = [0, 256], sizes = [2, 128], strides = [1, 1]} : vector<2x384xf32> to vector<2x128xf32>
    %126 = vector.extract_strided_slice %108 {offsets = [0, 256], sizes = [2, 128], strides = [1, 1]} : vector<2x384xf32> to vector<2x128xf32>
    %127 = arith.mulf %116, %126 : vector<2x128xf32>
    %128 = arith.addf %125, %127 : vector<2x128xf32>
    %129 = math.tanh %128 : vector<2x128xf32>
    %cst_25 = arith.constant 1.000000e+00 : f32
    %130 = vector.broadcast %cst_25 : f32 to vector<2x128xf32>
    %131 = arith.subf %130, %124 : vector<2x128xf32>
    %132 = arith.mulf %131, %129 : vector<2x128xf32>
    %133 = arith.mulf %124, %102 : vector<2x128xf32>
    %134 = arith.addf %132, %133 : vector<2x128xf32>
    %135 = vector.extract_strided_slice %2 {offsets = [0, 1536], sizes = [2, 384], strides = [1, 1]} : vector<2x2304xf32> to vector<2x384xf32>
    %136 = vector.broadcast %3 : vector<1x384xf32> to vector<2x384xf32>
    %137 = arith.addf %135, %136 : vector<2x384xf32>
    %cst_26 = arith.constant dense<0.000000e+00> : vector<2x384xf32>
    %138 = tpu.matmul %134, %5, %cst_26 {dimension_numbers = #tpu.dot_dimension_numbers<[1], [0], [0], [1], [0, 0, 1, 1], [], []>} : vector<2x128xf32>, vector<128x384xf32>, vector<2x384xf32> -> vector<2x384xf32>
    %139 = vector.broadcast %4 : vector<1x384xf32> to vector<2x384xf32>
    %140 = arith.addf %138, %139 : vector<2x384xf32>
    %141 = vector.extract_strided_slice %137 {offsets = [0, 0], sizes = [2, 128], strides = [1, 1]} : vector<2x384xf32> to vector<2x128xf32>
    %142 = vector.extract_strided_slice %140 {offsets = [0, 0], sizes = [2, 128], strides = [1, 1]} : vector<2x384xf32> to vector<2x128xf32>
    %143 = arith.addf %141, %142 : vector<2x128xf32>
    %144 = arith.negf %143 : vector<2x128xf32>
    %145 = math.exp %144 : vector<2x128xf32>
    %cst_27 = arith.constant 1.000000e+00 : f32
    %146 = vector.broadcast %cst_27 : f32 to vector<2x128xf32>
    %147 = arith.addf %146, %145 : vector<2x128xf32>
    %148 = arith.divf %146, %147 : vector<2x128xf32>
    %149 = vector.extract_strided_slice %137 {offsets = [0, 128], sizes = [2, 128], strides = [1, 1]} : vector<2x384xf32> to vector<2x128xf32>
    %150 = vector.extract_strided_slice %140 {offsets = [0, 128], sizes = [2, 128], strides = [1, 1]} : vector<2x384xf32> to vector<2x128xf32>
    %151 = arith.addf %149, %150 : vector<2x128xf32>
    %152 = arith.negf %151 : vector<2x128xf32>
    %153 = math.exp %152 : vector<2x128xf32>
    %cst_28 = arith.constant 1.000000e+00 : f32
    %154 = vector.broadcast %cst_28 : f32 to vector<2x128xf32>
    %155 = arith.addf %154, %153 : vector<2x128xf32>
    %156 = arith.divf %154, %155 : vector<2x128xf32>
    %157 = vector.extract_strided_slice %137 {offsets = [0, 256], sizes = [2, 128], strides = [1, 1]} : vector<2x384xf32> to vector<2x128xf32>
    %158 = vector.extract_strided_slice %140 {offsets = [0, 256], sizes = [2, 128], strides = [1, 1]} : vector<2x384xf32> to vector<2x128xf32>
    %159 = arith.mulf %148, %158 : vector<2x128xf32>
    %160 = arith.addf %157, %159 : vector<2x128xf32>
    %161 = math.tanh %160 : vector<2x128xf32>
    %cst_29 = arith.constant 1.000000e+00 : f32
    %162 = vector.broadcast %cst_29 : f32 to vector<2x128xf32>
    %163 = arith.subf %162, %156 : vector<2x128xf32>
    %164 = arith.mulf %163, %161 : vector<2x128xf32>
    %165 = arith.mulf %156, %134 : vector<2x128xf32>
    %166 = arith.addf %164, %165 : vector<2x128xf32>
    %167 = vector.extract_strided_slice %2 {offsets = [0, 1920], sizes = [2, 384], strides = [1, 1]} : vector<2x2304xf32> to vector<2x384xf32>
    %168 = vector.broadcast %3 : vector<1x384xf32> to vector<2x384xf32>
    %169 = arith.addf %167, %168 : vector<2x384xf32>
    %cst_30 = arith.constant dense<0.000000e+00> : vector<2x384xf32>
    %170 = tpu.matmul %166, %5, %cst_30 {dimension_numbers = #tpu.dot_dimension_numbers<[1], [0], [0], [1], [0, 0, 1, 1], [], []>} : vector<2x128xf32>, vector<128x384xf32>, vector<2x384xf32> -> vector<2x384xf32>
    %171 = vector.broadcast %4 : vector<1x384xf32> to vector<2x384xf32>
    %172 = arith.addf %170, %171 : vector<2x384xf32>
    %173 = vector.extract_strided_slice %169 {offsets = [0, 0], sizes = [2, 128], strides = [1, 1]} : vector<2x384xf32> to vector<2x128xf32>
    %174 = vector.extract_strided_slice %172 {offsets = [0, 0], sizes = [2, 128], strides = [1, 1]} : vector<2x384xf32> to vector<2x128xf32>
    %175 = arith.addf %173, %174 : vector<2x128xf32>
    %176 = arith.negf %175 : vector<2x128xf32>
    %177 = math.exp %176 : vector<2x128xf32>
    %cst_31 = arith.constant 1.000000e+00 : f32
    %178 = vector.broadcast %cst_31 : f32 to vector<2x128xf32>
    %179 = arith.addf %178, %177 : vector<2x128xf32>
    %180 = arith.divf %178, %179 : vector<2x128xf32>
    %181 = vector.extract_strided_slice %169 {offsets = [0, 128], sizes = [2, 128], strides = [1, 1]} : vector<2x384xf32> to vector<2x128xf32>
    %182 = vector.extract_strided_slice %172 {offsets = [0, 128], sizes = [2, 128], strides = [1, 1]} : vector<2x384xf32> to vector<2x128xf32>
    %183 = arith.addf %181, %182 : vector<2x128xf32>
    %184 = arith.negf %183 : vector<2x128xf32>
    %185 = math.exp %184 : vector<2x128xf32>
    %cst_32 = arith.constant 1.000000e+00 : f32
    %186 = vector.broadcast %cst_32 : f32 to vector<2x128xf32>
    %187 = arith.addf %186, %185 : vector<2x128xf32>
    %188 = arith.divf %186, %187 : vector<2x128xf32>
    %189 = vector.extract_strided_slice %169 {offsets = [0, 256], sizes = [2, 128], strides = [1, 1]} : vector<2x384xf32> to vector<2x128xf32>
    %190 = vector.extract_strided_slice %172 {offsets = [0, 256], sizes = [2, 128], strides = [1, 1]} : vector<2x384xf32> to vector<2x128xf32>
    %191 = arith.mulf %180, %190 : vector<2x128xf32>
    %192 = arith.addf %189, %191 : vector<2x128xf32>
    %193 = math.tanh %192 : vector<2x128xf32>
    %cst_33 = arith.constant 1.000000e+00 : f32
    %194 = vector.broadcast %cst_33 : f32 to vector<2x128xf32>
    %195 = arith.subf %194, %188 : vector<2x128xf32>
    %196 = arith.mulf %195, %193 : vector<2x128xf32>
    %197 = arith.mulf %188, %166 : vector<2x128xf32>
    %198 = arith.addf %196, %197 : vector<2x128xf32>
    %c0_34 = arith.constant 0 : index
    %c0_35 = arith.constant 0 : index
    %199 = vector.load %arg6[%c0_34, %c0_35] : memref<128x64xf32, #tpu.memory_space<vmem>>, vector<128x64xf32>
    %cst_36 = arith.constant dense<0.000000e+00> : vector<2x64xf32>
    %200 = tpu.matmul %198, %199, %cst_36 {dimension_numbers = #tpu.dot_dimension_numbers<[1], [0], [0], [1], [0, 0, 1, 1], [], []>} : vector<2x128xf32>, vector<128x64xf32>, vector<2x64xf32> -> vector<2x64xf32>
    %c0_37 = arith.constant 0 : index
    %c0_38 = arith.constant 0 : index
    %201 = vector.load %arg7[%c0_37, %c0_38] : memref<1x64xf32, #tpu.memory_space<vmem>>, vector<1x64xf32>
    %202 = vector.broadcast %201 : vector<1x64xf32> to vector<2x64xf32>
    %203 = arith.addf %200, %202 : vector<2x64xf32>
    %cst_39 = arith.constant 0.000000e+00 : f32
    %204 = vector.broadcast %cst_39 : f32 to vector<2x64xf32>
    %205 = arith.maximumf %203, %204 : vector<2x64xf32>
    %c0_40 = arith.constant 0 : index
    %c0_41 = arith.constant 0 : index
    %206 = vector.load %arg8[%c0_40, %c0_41] : memref<64x11xf32, #tpu.memory_space<vmem>>, vector<64x11xf32>
    %cst_42 = arith.constant dense<0.000000e+00> : vector<2x11xf32>
    %207 = tpu.matmul %205, %206, %cst_42 {dimension_numbers = #tpu.dot_dimension_numbers<[1], [0], [0], [1], [0, 0, 1, 1], [], []>} : vector<2x64xf32>, vector<64x11xf32>, vector<2x11xf32> -> vector<2x11xf32>
    %c0_43 = arith.constant 0 : index
    %c0_44 = arith.constant 0 : index
    %208 = vector.load %arg9[%c0_43, %c0_44] : memref<1x11xf32, #tpu.memory_space<vmem>>, vector<1x11xf32>
    %209 = vector.broadcast %208 : vector<1x11xf32> to vector<2x11xf32>
    %210 = arith.addf %207, %209 : vector<2x11xf32>
    %c0_45 = arith.constant 0 : index
    %c0_46 = arith.constant 0 : index
    %211 = vector.load %arg15[%c0_45, %c0_46] : memref<2x139xf32, #tpu.memory_space<vmem>>, vector<2x128xf32>
    tpu.vector_store %arg15[%c0_45, %c0_46], %198 {strides = array<i32>} : memref<2x139xf32, #tpu.memory_space<vmem>>, vector<2x128xf32>,
    %c0_47 = arith.constant 0 : index
    %c128 = arith.constant 128 : index
    %212 = vector.load %arg15[%c0_47, %c128] : memref<2x139xf32, #tpu.memory_space<vmem>>, vector<2x11xf32>
    tpu.vector_store %arg15[%c0_47, %c128], %210 {strides = array<i32>} : memref<2x139xf32, #tpu.memory_space<vmem>>, vector<2x11xf32>,
    %c0_48 = arith.constant 0 : index
    %c0_49 = arith.constant 0 : index
    %213 = vector.load %arg10[%c0_48, %c0_49] : memref<128x64xf32, #tpu.memory_space<vmem>>, vector<128x64xf32>
    %cst_50 = arith.constant dense<0.000000e+00> : vector<2x64xf32>
    %214 = tpu.matmul %198, %213, %cst_50 {dimension_numbers = #tpu.dot_dimension_numbers<[1], [0], [0], [1], [0, 0, 1, 1], [], []>} : vector<2x128xf32>, vector<128x64xf32>, vector<2x64xf32> -> vector<2x64xf32>
    %c0_51 = arith.constant 0 : index
    %c0_52 = arith.constant 0 : index
    %215 = vector.load %arg11[%c0_51, %c0_52] : memref<11x64xf32, #tpu.memory_space<vmem>>, vector<11x64xf32>
    %cst_53 = arith.constant dense<0.000000e+00> : vector<2x64xf32>
    %216 = tpu.matmul %210, %215, %cst_53 {dimension_numbers = #tpu.dot_dimension_numbers<[1], [0], [0], [1], [0, 0, 1, 1], [], []>} : vector<2x11xf32>, vector<11x64xf32>, vector<2x64xf32> -> vector<2x64xf32>
    %217 = arith.addf %214, %216 : vector<2x64xf32>
    %c0_54 = arith.constant 0 : index
    %c0_55 = arith.constant 0 : index
    %218 = vector.load %arg12[%c0_54, %c0_55] : memref<1x64xf32, #tpu.memory_space<vmem>>, vector<1x64xf32>
    %219 = vector.broadcast %218 : vector<1x64xf32> to vector<2x64xf32>
    %220 = arith.addf %217, %219 : vector<2x64xf32>
    %cst_56 = arith.constant 0.000000e+00 : f32
    %221 = vector.broadcast %cst_56 : f32 to vector<2x64xf32>
    %222 = arith.maximumf %220, %221 : vector<2x64xf32>
    %c0_57 = arith.constant 0 : index
    %c0_58 = arith.constant 0 : index
    %223 = vector.load %arg13[%c0_57, %c0_58] : memref<64x2xf32, #tpu.memory_space<vmem>>, vector<64x2xf32>
    %cst_59 = arith.constant dense<0.000000e+00> : vector<2x2xf32>
    %224 = tpu.matmul %222, %223, %cst_59 {dimension_numbers = #tpu.dot_dimension_numbers<[1], [0], [0], [1], [0, 0, 1, 1], [], []>} : vector<2x64xf32>, vector<64x2xf32>, vector<2x2xf32> -> vector<2x2xf32>
    %c0_60 = arith.constant 0 : index
    %c0_61 = arith.constant 0 : index
    %225 = vector.load %arg14[%c0_60, %c0_61] : memref<1x2xf32, #tpu.memory_space<vmem>>, vector<1x2xf32>
    %226 = vector.broadcast %225 : vector<1x2xf32> to vector<2x2xf32>
    %227 = arith.addf %224, %226 : vector<2x2xf32>
    %c0_62 = arith.constant 0 : index
    %c0_63 = arith.constant 0 : index
    %228 = vector.load %arg16[%c0_62, %c0_63] : memref<2x2xf32, #tpu.memory_space<vmem>>, vector<2x2xf32>
    tpu.vector_store %arg16[%c0_62, %c0_63], %227 {strides = array<i32>} : memref<2x2xf32, #tpu.memory_space<vmem>>, vector<2x2xf32>,
    return
  }
  func.func @transform_0(%arg0: i32) -> (i32, i32) {
    %c0_i32 = arith.constant 0 : i32
    %c0_i32_0 = arith.constant 0 : i32
    return %arg0, %c0_i32 : i32, i32
  }
  func.func @transform_1(%arg0: i32) -> (i32, i32) {
    %c0_i32 = arith.constant 0 : i32
    %c0_i32_0 = arith.constant 0 : i32
    %c0_i32_1 = arith.constant 0 : i32
    return %c0_i32, %c0_i32_0 : i32, i32
  }
  func.func @transform_2(%arg0: i32) -> (i32, i32) {
    %c0_i32 = arith.constant 0 : i32
    %c0_i32_0 = arith.constant 0 : i32
    %c0_i32_1 = arith.constant 0 : i32
    return %c0_i32, %c0_i32_0 : i32, i32
  }
  func.func @transform_3(%arg0: i32) -> (i32, i32) {
    %c0_i32 = arith.constant 0 : i32
    %c0_i32_0 = arith.constant 0 : i32
    %c0_i32_1 = arith.constant 0 : i32
    return %c0_i32, %c0_i32_0 : i32, i32
  }
  func.func @transform_4(%arg0: i32) -> (i32, i32) {
    %c0_i32 = arith.constant 0 : i32
    %c0_i32_0 = arith.constant 0 : i32
    %c0_i32_1 = arith.constant 0 : i32
    return %c0_i32, %c0_i32_0 : i32, i32
  }
  func.func @transform_5(%arg0: i32) -> (i32, i32) {
    %c0_i32 = arith.constant 0 : i32
    %c0_i32_0 = arith.constant 0 : i32
    %c0_i32_1 = arith.constant 0 : i32
    return %c0_i32, %c0_i32_0 : i32, i32
  }
  func.func @transform_6(%arg0: i32) -> (i32, i32) {
    %c0_i32 = arith.constant 0 : i32
    %c0_i32_0 = arith.constant 0 : i32
    %c0_i32_1 = arith.constant 0 : i32
    return %c0_i32, %c0_i32_0 : i32, i32
  }
  func.func @transform_7(%arg0: i32) -> (i32, i32) {
    %c0_i32 = arith.constant 0 : i32
    %c0_i32_0 = arith.constant 0 : i32
    %c0_i32_1 = arith.constant 0 : i32
    return %c0_i32, %c0_i32_0 : i32, i32
  }
  func.func @transform_8(%arg0: i32) -> (i32, i32) {
    %c0_i32 = arith.constant 0 : i32
    %c0_i32_0 = arith.constant 0 : i32
    %c0_i32_1 = arith.constant 0 : i32
    return %c0_i32, %c0_i32_0 : i32, i32
  }
  func.func @transform_9(%arg0: i32) -> (i32, i32) {
    %c0_i32 = arith.constant 0 : i32
    %c0_i32_0 = arith.constant 0 : i32
    %c0_i32_1 = arith.constant 0 : i32
    return %c0_i32, %c0_i32_0 : i32, i32
  }
  func.func @transform_10(%arg0: i32) -> (i32, i32) {
    %c0_i32 = arith.constant 0 : i32
    %c0_i32_0 = arith.constant 0 : i32
    %c0_i32_1 = arith.constant 0 : i32
    return %c0_i32, %c0_i32_0 : i32, i32
  }
  func.func @transform_11(%arg0: i32) -> (i32, i32) {
    %c0_i32 = arith.constant 0 : i32
    %c0_i32_0 = arith.constant 0 : i32
    %c0_i32_1 = arith.constant 0 : i32
    return %c0_i32, %c0_i32_0 : i32, i32
  }
  func.func @transform_12(%arg0: i32) -> (i32, i32) {
    %c0_i32 = arith.constant 0 : i32
    %c0_i32_0 = arith.constant 0 : i32
    %c0_i32_1 = arith.constant 0 : i32
    return %c0_i32, %c0_i32_0 : i32, i32
  }
  func.func @transform_13(%arg0: i32) -> (i32, i32) {
    %c0_i32 = arith.constant 0 : i32
    %c0_i32_0 = arith.constant 0 : i32
    %c0_i32_1 = arith.constant 0 : i32
    return %c0_i32, %c0_i32_0 : i32, i32
  }
  func.func @transform_14(%arg0: i32) -> (i32, i32) {
    %c0_i32 = arith.constant 0 : i32
    %c0_i32_0 = arith.constant 0 : i32
    return %arg0, %c0_i32 : i32, i32
  }
  func.func @transform_15(%arg0: i32) -> (i32, i32) {
    %c0_i32 = arith.constant 0 : i32
    %c0_i32_0 = arith.constant 0 : i32
    return %arg0, %c0_i32 : i32, i32
  }
}

</mosaic_0001>

<llo_original>
// kernel: tpu_custom_call.1
$region0: #{tpu_custom_call.1}
  #allocation0 [shape = 'u32[]', space=smem, size = 0x4, offset = 0x4, fixed_abs, tag = 'smem constant byte address 0x4 - core index']
  #allocation1 [shape = 'u32[72,128]{1,0:T(1,128)}', space=vmem, size = 0x9000, scoped, tag = 'internal scratch']
  %s0 = inlined_call_operand.vmem [shape: f32[2,24], index: 0, kind: input, shape index: {}]
  %s1 = inlined_call_operand.hbm [shape: f32[24,2304], index: 1, kind: input, shape index: {}]
  %s2 = inlined_call_operand.vmem [shape: f32[1,384], index: 2, kind: input, shape index: {}]
  %s3 = inlined_call_operand.hbm [shape: f32[128,384], index: 3, kind: input, shape index: {}]
  %s4 = inlined_call_operand.vmem [shape: f32[1,384], index: 4, kind: input, shape index: {}]
  %s5 = inlined_call_operand.vmem [shape: f32[128,64], index: 5, kind: input, shape index: {}]
  %s6 = inlined_call_operand.vmem [shape: f32[1,64], index: 6, kind: input, shape index: {}]
  %s7 = inlined_call_operand.vmem [shape: f32[64,11], index: 7, kind: input, shape index: {}]
  %s8 = inlined_call_operand.vmem [shape: f32[1,11], index: 8, kind: input, shape index: {}]
  %s9 = inlined_call_operand.vmem [shape: f32[128,64], index: 9, kind: input, shape index: {}]
  %s10 = inlined_call_operand.vmem [shape: f32[11,64], index: 10, kind: input, shape index: {}]
  %s11 = inlined_call_operand.vmem [shape: f32[1,64], index: 11, kind: input, shape index: {}]
  %s12 = inlined_call_operand.vmem [shape: f32[64,2], index: 12, kind: input, shape index: {}]
  %s13 = inlined_call_operand.vmem [shape: f32[1,2], index: 13, kind: input, shape index: {}]
  %s14 = inlined_call_operand.hbm [shape: f32[2,139], index: 14, kind: output, shape index: {0}]
  %s15 = inlined_call_operand.hbm [shape: f32[2,2], index: 15, kind: output, shape index: {1}]
  %16 = xla_tuple %s14, %s15
  %s17 = sld [smem:[#allocation0]]
  $region82: #{tpu_custom_call.1} parent=0
    _
  %s19 = ssub.s32 1, %s17
  %s20 = scalar_select 0, %s19, %s17
  $region1: #{tpu_custom_call.1} parent=0
    #allocation2 [shape = 'u8[221184]{0}', space=vmem, size = 0x36000, scoped, tag = 'input window, operand 1, single buffered']
    #allocation3 [shape = 's32[1]{0}', space=sflag, size = 0x4, scoped, tag = 'scoped memory for tpu_custom_call.1']
    #allocation4 [shape = 's32[1]{0}', space=sflag, size = 0x4, scoped, tag = 'scoped memory for tpu_custom_call.1']
    #allocation5 [shape = 'u8[196608]{0}', space=vmem, size = 0x30000, scoped, tag = 'input window, operand 3, single buffered']
    #allocation6 [shape = 's32[1]{0}', space=sflag, size = 0x4, scoped, tag = 'scoped memory for tpu_custom_call.1']
    #allocation7 [shape = 'u8[2048]{0}', space=vmem, size = 0x800, scoped, tag = 'output window, operand 0, single buffered']
    #allocation8 [shape = 'u8[1024]{0}', space=vmem, size = 0x400, scoped, tag = 'output window, operand 1, single buffered']
    #allocation9 [shape = 's32[1]{0}', space=sflag, size = 0x4, scoped, tag = 'scoped memory for tpu_custom_call.1']
    %21 = vsyncpa [#allocation3], 0
    %22 = vsyncpa [#allocation6], 0
    %23 = vsyncpa [#allocation4], 0
    %24 = vsyncpa [#allocation9], 0
    // Predicated region
    $region2: #{tpu_custom_call.1} parent=1 // pred_check
      _
    $region3: #{tpu_custom_call.1} parent=1 // pred_check_branch
      %26 = sbr.rel (0) target = $region5
    $region4: #{tpu_custom_call.1} parent=1 // pred_region
      _
    $region5: #{tpu_custom_call.1} parent=1 // pred_fallthru
      _
    // Predicated region
    $region6: #{tpu_custom_call.1} parent=1 // pred_check
      _
    $region7: #{tpu_custom_call.1} parent=1 // pred_check_branch
      %28 = sbr.rel (0) target = $region9
    $region8: #{tpu_custom_call.1} parent=1 // pred_region
      %30 = vsyncadd [#allocation3], 0
      %s31 = sshll.u32 %s1, 4
      %s32 = int_to_ptr.hbm [resolvable:$true] %s31
      %s33 = sshll.u32 [#allocation2], 4
      %s34 = int_to_ptr.vmem [resolvable:$true] %s33
      %39 = dma.hbm_to_vmem [thread:$0]  %s32, 6912, %s34, [#allocation3], 2304, 2304, 144
    $region9: #{tpu_custom_call.1} parent=1 // pred_fallthru
      _
    // Predicated region
    $region10: #{tpu_custom_call.1} parent=1 // pred_check
      _
    $region11: #{tpu_custom_call.1} parent=1 // pred_check_branch
      %41 = sbr.rel (0) target = $region13
    $region12: #{tpu_custom_call.1} parent=1 // pred_region
      _
    $region13: #{tpu_custom_call.1} parent=1 // pred_fallthru
      _
    // Predicated region
    $region14: #{tpu_custom_call.1} parent=1 // pred_check
      _
    $region15: #{tpu_custom_call.1} parent=1 // pred_check_branch
      %43 = sbr.rel (0) target = $region17
    $region16: #{tpu_custom_call.1} parent=1 // pred_region
      %45 = vsyncadd [#allocation6], 0
      %s46 = sshll.u32 %s3, 4
      %s47 = int_to_ptr.hbm [resolvable:$true] %s46
      %s48 = sshll.u32 [#allocation5], 4
      %s49 = int_to_ptr.vmem [resolvable:$true] %s48
      %54 = dma.hbm_to_vmem [thread:$0]  %s47, 6144, %s49, [#allocation6], 384, 384, 24
    $region17: #{tpu_custom_call.1} parent=1 // pred_fallthru
      _
    // Predicated region
    $region18: #{tpu_custom_call.1} parent=1 // pred_check
      _
    $region19: #{tpu_custom_call.1} parent=1 // pred_check_branch
      %56 = sbr.rel (0) target = $region21
    $region20: #{tpu_custom_call.1} parent=1 // pred_region
      _
    $region21: #{tpu_custom_call.1} parent=1 // pred_fallthru
      _
    // Predicated region
    $region22: #{tpu_custom_call.1} parent=1 // pred_check
      _
    $region23: #{tpu_custom_call.1} parent=1 // pred_check_branch
      %58 = sbr.rel (0) target = $region25
    $region24: #{tpu_custom_call.1} parent=1 // pred_region
      _
    $region25: #{tpu_custom_call.1} parent=1 // pred_fallthru
      _
    // Predicated region
    $region26: #{tpu_custom_call.1} parent=1 // pred_check
      _
    $region27: #{tpu_custom_call.1} parent=1 // pred_check_branch
      %60 = sbr.rel (0) target = $region29
    $region28: #{tpu_custom_call.1} parent=1 // pred_region
      _
    $region29: #{tpu_custom_call.1} parent=1 // pred_fallthru
      _
    // Predicated region
    $region30: #{tpu_custom_call.1} parent=1 // pred_check
      _
    $region31: #{tpu_custom_call.1} parent=1 // pred_check_branch
      %62 = sbr.rel (0) target = $region33
    $region32: #{tpu_custom_call.1} parent=1 // pred_region
      _
    $region33: #{tpu_custom_call.1} parent=1 // pred_fallthru
      _
    // Predicated region
    $region34: #{tpu_custom_call.1} parent=1 // pred_check
      _
    $region35: #{tpu_custom_call.1} parent=1 // pred_check_branch
      %64 = sbr.rel (0) target = $region37
    $region36: #{tpu_custom_call.1} parent=1 // pred_region
      _
    $region37: #{tpu_custom_call.1} parent=1 // pred_fallthru
      _
    // Predicated region
    $region38: #{tpu_custom_call.1} parent=1 // pred_check
      _
    $region39: #{tpu_custom_call.1} parent=1 // pred_check_branch
      %66 = sbr.rel (0) target = $region41
    $region40: #{tpu_custom_call.1} parent=1 // pred_region
      _
    $region41: #{tpu_custom_call.1} parent=1 // pred_fallthru
      _
    // Predicated region
    $region42: #{tpu_custom_call.1} parent=1 // pred_check
      _
    $region43: #{tpu_custom_call.1} parent=1 // pred_check_branch
      %68 = sbr.rel (0) target = $region45
    $region44: #{tpu_custom_call.1} parent=1 // pred_region
      _
    $region45: #{tpu_custom_call.1} parent=1 // pred_fallthru
      _
    // Predicated region
    $region46: #{tpu_custom_call.1} parent=1 // pred_check
      _
    $region47: #{tpu_custom_call.1} parent=1 // pred_check_branch
      %70 = sbr.rel (0) target = $region49
    $region48: #{tpu_custom_call.1} parent=1 // pred_region
      _
    $region49: #{tpu_custom_call.1} parent=1 // pred_fallthru
      _
    // Predicated region
    $region50: #{tpu_custom_call.1} parent=1 // pred_check
      _
    $region51: #{tpu_custom_call.1} parent=1 // pred_check_branch
      %72 = sbr.rel (0) target = $region53
    $region52: #{tpu_custom_call.1} parent=1 // pred_region
      _
    $region53: #{tpu_custom_call.1} parent=1 // pred_fallthru
      _
    // Predicated region
    $region54: #{tpu_custom_call.1} parent=1 // pred_check
      _
    $region55: #{tpu_custom_call.1} parent=1 // pred_check_branch
      %74 = sbr.rel (0) target = $region57
    $region56: #{tpu_custom_call.1} parent=1 // pred_region
      _
    $region57: #{tpu_custom_call.1} parent=1 // pred_fallthru
      _
    // Predicated region
    $region58: #{tpu_custom_call.1} parent=1 // pred_check
      _
    $region59: #{tpu_custom_call.1} parent=1 // pred_check_branch
      %76 = sbr.rel (0) target = $region61
    $region60: #{tpu_custom_call.1} parent=1 // pred_region
      %78 = dma.done [#allocation3], 6912
    $region61: #{tpu_custom_call.1} parent=1 // pred_fallthru
      _
    // Predicated region
    $region62: #{tpu_custom_call.1} parent=1 // pred_check
      _
    $region63: #{tpu_custom_call.1} parent=1 // pred_check_branch
      %80 = sbr.rel (0) target = $region65
    $region64: #{tpu_custom_call.1} parent=1 // pred_region
      %82 = dma.done [#allocation6], 6144
    $region65: #{tpu_custom_call.1} parent=1 // pred_fallthru
      _
    %v83 = vld [vmem:[%s0] sm:$0x3]
    %v84 = vld [vmem:[#allocation2] sm:$0xff]
    %v85 = vld [vmem:[#allocation2 + $0x8] sm:$0xff]
    %v86 = vld [vmem:[#allocation2 + $0x10] sm:$0xff]
    %v87 = vld [vmem:[#allocation2 + $0x18] sm:$0xff]
    %v88 = vld [vmem:[#allocation2 + $0x20] sm:$0xff]
    %v89 = vld [vmem:[#allocation2 + $0x28] sm:$0xff]
    %v90 = vld [vmem:[#allocation2 + $0x30] sm:$0xff]
    %v91 = vld [vmem:[#allocation2 + $0x38] sm:$0xff]
    %v92 = vld [vmem:[#allocation2 + $0x40] sm:$0xff]
    %v93 = vld [vmem:[#allocation2 + $0x48] sm:$0xff]
    %v94 = vld [vmem:[#allocation2 + $0x50] sm:$0xff]
    %v95 = vld [vmem:[#allocation2 + $0x58] sm:$0xff]
    %v96 = vld [vmem:[#allocation2 + $0x60] sm:$0xff]
    %v97 = vld [vmem:[#allocation2 + $0x68] sm:$0xff]
    %v98 = vld [vmem:[#allocation2 + $0x70] sm:$0xff]
    %v99 = vld [vmem:[#allocation2 + $0x78] sm:$0xff]
    %v100 = vld [vmem:[#allocation2 + $0x80] sm:$0xff]
    %v101 = vld [vmem:[#allocation2 + $0x88] sm:$0xff]
    %v102 = vld [vmem:[#allocation2 + $0x90] sm:$0xff]
    %v103 = vld [vmem:[#allocation2 + $0x98] sm:$0xff]
    %v104 = vld [vmem:[#allocation2 + $0xa0] sm:$0xff]
    %v105 = vld [vmem:[#allocation2 + $0xa8] sm:$0xff]
    %v106 = vld [vmem:[#allocation2 + $0xb0] sm:$0xff]
    %v107 = vld [vmem:[#allocation2 + $0xb8] sm:$0xff]
    %v108 = vld [vmem:[#allocation2 + $0xc0] sm:$0xff]
    %v109 = vld [vmem:[#allocation2 + $0xc8] sm:$0xff]
    %v110 = vld [vmem:[#allocation2 + $0xd0] sm:$0xff]
    %v111 = vld [vmem:[#allocation2 + $0xd8] sm:$0xff]
    %v112 = vld [vmem:[#allocation2 + $0xe0] sm:$0xff]
    %v113 = vld [vmem:[#allocation2 + $0xe8] sm:$0xff]
    %v114 = vld [vmem:[#allocation2 + $0xf0] sm:$0xff]
    %v115 = vld [vmem:[#allocation2 + $0xf8] sm:$0xff]
    %v116 = vld [vmem:[#allocation2 + $0x100] sm:$0xff]
    %v117 = vld [vmem:[#allocation2 + $0x108] sm:$0xff]
    %v118 = vld [vmem:[#allocation2 + $0x110] sm:$0xff]
    %v119 = vld [vmem:[#allocation2 + $0x118] sm:$0xff]
    %v120 = vld [vmem:[#allocation2 + $0x120] sm:$0xff]
    %v121 = vld [vmem:[#allocation2 + $0x128] sm:$0xff]
    %v122 = vld [vmem:[#allocation2 + $0x130] sm:$0xff]
    %v123 = vld [vmem:[#allocation2 + $0x138] sm:$0xff]
    %v124 = vld [vmem:[#allocation2 + $0x140] sm:$0xff]
    %v125 = vld [vmem:[#allocation2 + $0x148] sm:$0xff]
    %v126 = vld [vmem:[#allocation2 + $0x150] sm:$0xff]
    %v127 = vld [vmem:[#allocation2 + $0x158] sm:$0xff]
    %v128 = vld [vmem:[#allocation2 + $0x160] sm:$0xff]
    %v129 = vld [vmem:[#allocation2 + $0x168] sm:$0xff]
    %v130 = vld [vmem:[#allocation2 + $0x170] sm:$0xff]
    %v131 = vld [vmem:[#allocation2 + $0x178] sm:$0xff]
    %v132 = vld [vmem:[#allocation2 + $0x180] sm:$0xff]
    %v133 = vld [vmem:[#allocation2 + $0x188] sm:$0xff]
    %v134 = vld [vmem:[#allocation2 + $0x190] sm:$0xff]
    %v135 = vld [vmem:[#allocation2 + $0x198] sm:$0xff]
    %v136 = vld [vmem:[#allocation2 + $0x1a0] sm:$0xff]
    %v137 = vld [vmem:[#allocation2 + $0x1a8] sm:$0xff]
    %vm138 = vcmask 195584
    %v140 = vsel %vm138, %v83, 0
    %142 = vmatpush.msra.mxu0 0.0
    %143 = vmatpush.msra.mxu0 0.0
    %144 = vmatpush.msra.mxu0 0.0
    %145 = vmatpush.msra.mxu0 0.0
    %146 = vmatpush.msra.mxu0 0.0
    %147 = vmatpush.msra.mxu0 0.0
    %148 = vmatpush.msra.mxu0 0.0
    %149 = vmatpush.msra.mxu0 0.0
    %150 = vmatpush.msra.mxu0 0.0
    %151 = vmatpush.msra.mxu0 0.0
    %152 = vmatpush.msra.mxu0 0.0
    %153 = vmatpush.msra.mxu0 0.0
    %154 = vmatpush.msra.mxu0 0.0
    %155 = vmatpush.msra.mxu0 %v120
    %156 = vmatpush.msra.mxu0 %v102
    %157 = vmatpush.msra.mxu0 %v84
    %158 = vmatmul.f32.gmra.mxu0 %v140
    %v159 = vpop.f32.mrf.mxu0
    %v160 = vadd.f32 0.0, %v159
    %161 = vdwg.mxu0
    %162 = vmatpush.msra.mxu0 0.0
    %163 = vmatpush.msra.mxu0 0.0
    %164 = vmatpush.msra.mxu0 0.0
    %165 = vmatpush.msra.mxu0 0.0
    %166 = vmatpush.msra.mxu0 0.0
    %167 = vmatpush.msra.mxu0 0.0
    %168 = vmatpush.msra.mxu0 0.0
    %169 = vmatpush.msra.mxu0 0.0
    %170 = vmatpush.msra.mxu0 0.0
    %171 = vmatpush.msra.mxu0 0.0
    %172 = vmatpush.msra.mxu0 0.0
    %173 = vmatpush.msra.mxu0 0.0
    %174 = vmatpush.msra.mxu0 0.0
    %175 = vmatpush.msra.mxu0 %v121
    %176 = vmatpush.msra.mxu0 %v103
    %177 = vmatpush.msra.mxu0 %v85
    %178 = vmatmul.f32.gmra.mxu0 %v140
    %v179 = vpop.f32.mrf.mxu0
    %v180 = vadd.f32 0.0, %v179
    %181 = vdwg.mxu0
    %182 = vmatpush.msra.mxu0 0.0
    %183 = vmatpush.msra.mxu0 0.0
    %184 = vmatpush.msra.mxu0 0.0
    %185 = vmatpush.msra.mxu0 0.0
    %186 = vmatpush.msra.mxu0 0.0
    %187 = vmatpush.msra.mxu0 0.0
    %188 = vmatpush.msra.mxu0 0.0
    %189 = vmatpush.msra.mxu0 0.0
    %190 = vmatpush.msra.mxu0 0.0
    %191 = vmatpush.msra.mxu0 0.0
    %192 = vmatpush.msra.mxu0 0.0
    %193 = vmatpush.msra.mxu0 0.0
    %194 = vmatpush.msra.mxu0 0.0
    %195 = vmatpush.msra.mxu0 %v122
    %196 = vmatpush.msra.mxu0 %v104
    %197 = vmatpush.msra.mxu0 %v86
    %198 = vmatmul.f32.gmra.mxu0 %v140
    %v199 = vpop.f32.mrf.mxu0
    %v200 = vadd.f32 0.0, %v199
    %201 = vdwg.mxu0
    %202 = vmatpush.msra.mxu0 0.0
    %203 = vmatpush.msra.mxu0 0.0
    %204 = vmatpush.msra.mxu0 0.0
    %205 = vmatpush.msra.mxu0 0.0
    %206 = vmatpush.msra.mxu0 0.0
    %207 = vmatpush.msra.mxu0 0.0
    %208 = vmatpush.msra.mxu0 0.0
    %209 = vmatpush.msra.mxu0 0.0
    %210 = vmatpush.msra.mxu0 0.0
    %211 = vmatpush.msra.mxu0 0.0
    %212 = vmatpush.msra.mxu0 0.0
    %213 = vmatpush.msra.mxu0 0.0
    %214 = vmatpush.msra.mxu0 0.0
    %215 = vmatpush.msra.mxu0 %v123
    %216 = vmatpush.msra.mxu0 %v105
    %217 = vmatpush.msra.mxu0 %v87
    %218 = vmatmul.f32.gmra.mxu0 %v140
    %v219 = vpop.f32.mrf.mxu0
    %v220 = vadd.f32 0.0, %v219
    %221 = vdwg.mxu0
    %222 = vmatpush.msra.mxu0 0.0
    %223 = vmatpush.msra.mxu0 0.0
    %224 = vmatpush.msra.mxu0 0.0
    %225 = vmatpush.msra.mxu0 0.0
    %226 = vmatpush.msra.mxu0 0.0
    %227 = vmatpush.msra.mxu0 0.0
    %228 = vmatpush.msra.mxu0 0.0
    %229 = vmatpush.msra.mxu0 0.0
    %230 = vmatpush.msra.mxu0 0.0
    %231 = vmatpush.msra.mxu0 0.0
    %232 = vmatpush.msra.mxu0 0.0
    %233 = vmatpush.msra.mxu0 0.0
    %234 = vmatpush.msra.mxu0 0.0
    %235 = vmatpush.msra.mxu0 %v124
    %236 = vmatpush.msra.mxu0 %v106
    %237 = vmatpush.msra.mxu0 %v88
    %238 = vmatmul.f32.gmra.mxu0 %v140
    %v239 = vpop.f32.mrf.mxu0
    %v240 = vadd.f32 0.0, %v239
    %241 = vdwg.mxu0
    %242 = vmatpush.msra.mxu0 0.0
    %243 = vmatpush.msra.mxu0 0.0
    %244 = vmatpush.msra.mxu0 0.0
    %245 = vmatpush.msra.mxu0 0.0
    %246 = vmatpush.msra.mxu0 0.0
    %247 = vmatpush.msra.mxu0 0.0
    %248 = vmatpush.msra.mxu0 0.0
    %249 = vmatpush.msra.mxu0 0.0
    %250 = vmatpush.msra.mxu0 0.0
    %251 = vmatpush.msra.mxu0 0.0
    %252 = vmatpush.msra.mxu0 0.0
    %253 = vmatpush.msra.mxu0 0.0
    %254 = vmatpush.msra.mxu0 0.0
    %255 = vmatpush.msra.mxu0 %v125
    %256 = vmatpush.msra.mxu0 %v107
    %257 = vmatpush.msra.mxu0 %v89
    %258 = vmatmul.f32.gmra.mxu0 %v140
    %v259 = vpop.f32.mrf.mxu0
    %v260 = vadd.f32 0.0, %v259
    %261 = vdwg.mxu0
    %262 = vmatpush.msra.mxu0 0.0
    %263 = vmatpush.msra.mxu0 0.0
    %264 = vmatpush.msra.mxu0 0.0
    %265 = vmatpush.msra.mxu0 0.0
    %266 = vmatpush.msra.mxu0 0.0
    %267 = vmatpush.msra.mxu0 0.0
    %268 = vmatpush.msra.mxu0 0.0
    %269 = vmatpush.msra.mxu0 0.0
    %270 = vmatpush.msra.mxu0 0.0
    %271 = vmatpush.msra.mxu0 0.0
    %272 = vmatpush.msra.mxu0 0.0
    %273 = vmatpush.msra.mxu0 0.0
    %274 = vmatpush.msra.mxu0 0.0
    %275 = vmatpush.msra.mxu0 %v126
    %276 = vmatpush.msra.mxu0 %v108
    %277 = vmatpush.msra.mxu0 %v90
    %278 = vmatmul.f32.gmra.mxu0 %v140
    %v279 = vpop.f32.mrf.mxu0
    %v280 = vadd.f32 0.0, %v279
    %281 = vdwg.mxu0
    %282 = vmatpush.msra.mxu0 0.0
    %283 = vmatpush.msra.mxu0 0.0
    %284 = vmatpush.msra.mxu0 0.0
    %285 = vmatpush.msra.mxu0 0.0
    %286 = vmatpush.msra.mxu0 0.0
    %287 = vmatpush.msra.mxu0 0.0
    %288 = vmatpush.msra.mxu0 0.0
    %289 = vmatpush.msra.mxu0 0.0
    %290 = vmatpush.msra.mxu0 0.0
    %291 = vmatpush.msra.mxu0 0.0
    %292 = vmatpush.msra.mxu0 0.0
    %293 = vmatpush.msra.mxu0 0.0
    %294 = vmatpush.msra.mxu0 0.0
    %295 = vmatpush.msra.mxu0 %v127
    %296 = vmatpush.msra.mxu0 %v109
    %297 = vmatpush.msra.mxu0 %v91
    %298 = vmatmul.f32.gmra.mxu0 %v140
    %v299 = vpop.f32.mrf.mxu0
    %v300 = vadd.f32 0.0, %v299
    %301 = vdwg.mxu0
    %302 = vmatpush.msra.mxu0 0.0
    %303 = vmatpush.msra.mxu0 0.0
    %304 = vmatpush.msra.mxu0 0.0
    %305 = vmatpush.msra.mxu0 0.0
    %306 = vmatpush.msra.mxu0 0.0
    %307 = vmatpush.msra.mxu0 0.0
    %308 = vmatpush.msra.mxu0 0.0
    %309 = vmatpush.msra.mxu0 0.0
    %310 = vmatpush.msra.mxu0 0.0
    %311 = vmatpush.msra.mxu0 0.0
    %312 = vmatpush.msra.mxu0 0.0
    %313 = vmatpush.msra.mxu0 0.0
    %314 = vmatpush.msra.mxu0 0.0
    %315 = vmatpush.msra.mxu0 %v128
    %316 = vmatpush.msra.mxu0 %v110
    %317 = vmatpush.msra.mxu0 %v92
    %318 = vmatmul.f32.gmra.mxu0 %v140
    %v319 = vpop.f32.mrf.mxu0
    %v320 = vadd.f32 0.0, %v319
    %321 = vdwg.mxu0
    %322 = vmatpush.msra.mxu0 0.0
    %323 = vmatpush.msra.mxu0 0.0
    %324 = vmatpush.msra.mxu0 0.0
    %325 = vmatpush.msra.mxu0 0.0
    %326 = vmatpush.msra.mxu0 0.0
    %327 = vmatpush.msra.mxu0 0.0
    %328 = vmatpush.msra.mxu0 0.0
    %329 = vmatpush.msra.mxu0 0.0
    %330 = vmatpush.msra.mxu0 0.0
    %331 = vmatpush.msra.mxu0 0.0
    %332 = vmatpush.msra.mxu0 0.0
    %333 = vmatpush.msra.mxu0 0.0
    %334 = vmatpush.msra.mxu0 0.0
    %335 = vmatpush.msra.mxu0 %v129
    %336 = vmatpush.msra.mxu0 %v111
    %337 = vmatpush.msra.mxu0 %v93
    %338 = vmatmul.f32.gmra.mxu0 %v140
    %v339 = vpop.f32.mrf.mxu0
    %v340 = vadd.f32 0.0, %v339
    %341 = vdwg.mxu0
    %342 = vmatpush.msra.mxu0 0.0
    %343 = vmatpush.msra.mxu0 0.0
    %344 = vmatpush.msra.mxu0 0.0
    %345 = vmatpush.msra.mxu0 0.0
    %346 = vmatpush.msra.mxu0 0.0
    %347 = vmatpush.msra.mxu0 0.0
    %348 = vmatpush.msra.mxu0 0.0
    %349 = vmatpush.msra.mxu0 0.0
    %350 = vmatpush.msra.mxu0 0.0
    %351 = vmatpush.msra.mxu0 0.0
    %352 = vmatpush.msra.mxu0 0.0
    %353 = vmatpush.msra.mxu0 0.0
    %354 = vmatpush.msra.mxu0 0.0
    %355 = vmatpush.msra.mxu0 %v130
    %356 = vmatpush.msra.mxu0 %v112
    %357 = vmatpush.msra.mxu0 %v94
    %358 = vmatmul.f32.gmra.mxu0 %v140
    %v359 = vpop.f32.mrf.mxu0
    %v360 = vadd.f32 0.0, %v359
    %361 = vdwg.mxu0
    %362 = vmatpush.msra.mxu0 0.0
    %363 = vmatpush.msra.mxu0 0.0
    %364 = vmatpush.msra.mxu0 0.0
    %365 = vmatpush.msra.mxu0 0.0
    %366 = vmatpush.msra.mxu0 0.0
    %367 = vmatpush.msra.mxu0 0.0
    %368 = vmatpush.msra.mxu0 0.0
    %369 = vmatpush.msra.mxu0 0.0
    %370 = vmatpush.msra.mxu0 0.0
    %371 = vmatpush.msra.mxu0 0.0
    %372 = vmatpush.msra.mxu0 0.0
    %373 = vmatpush.msra.mxu0 0.0
    %374 = vmatpush.msra.mxu0 0.0
    %375 = vmatpush.msra.mxu0 %v131
    %376 = vmatpush.msra.mxu0 %v113
    %377 = vmatpush.msra.mxu0 %v95
    %378 = vmatmul.f32.gmra.mxu0 %v140
    %v379 = vpop.f32.mrf.mxu0
    %v380 = vadd.f32 0.0, %v379
    %381 = vdwg.mxu0
    %382 = vmatpush.msra.mxu0 0.0
    %383 = vmatpush.msra.mxu0 0.0
    %384 = vmatpush.msra.mxu0 0.0
    %385 = vmatpush.msra.mxu0 0.0
    %386 = vmatpush.msra.mxu0 0.0
    %387 = vmatpush.msra.mxu0 0.0
    %388 = vmatpush.msra.mxu0 0.0
    %389 = vmatpush.msra.mxu0 0.0
    %390 = vmatpush.msra.mxu0 0.0
    %391 = vmatpush.msra.mxu0 0.0
    %392 = vmatpush.msra.mxu0 0.0
    %393 = vmatpush.msra.mxu0 0.0
    %394 = vmatpush.msra.mxu0 0.0
    %395 = vmatpush.msra.mxu0 %v132
    %396 = vmatpush.msra.mxu0 %v114
    %397 = vmatpush.msra.mxu0 %v96
    %398 = vmatmul.f32.gmra.mxu0 %v140
    %v399 = vpop.f32.mrf.mxu0
    %v400 = vadd.f32 0.0, %v399
    %401 = vdwg.mxu0
    %402 = vmatpush.msra.mxu0 0.0
    %403 = vmatpush.msra.mxu0 0.0
    %404 = vmatpush.msra.mxu0 0.0
    %405 = vmatpush.msra.mxu0 0.0
    %406 = vmatpush.msra.mxu0 0.0
    %407 = vmatpush.msra.mxu0 0.0
    %408 = vmatpush.msra.mxu0 0.0
    %409 = vmatpush.msra.mxu0 0.0
    %410 = vmatpush.msra.mxu0 0.0
    %411 = vmatpush.msra.mxu0 0.0
    %412 = vmatpush.msra.mxu0 0.0
    %413 = vmatpush.msra.mxu0 0.0
    %414 = vmatpush.msra.mxu0 0.0
    %415 = vmatpush.msra.mxu0 %v133
    %416 = vmatpush.msra.mxu0 %v115
    %417 = vmatpush.msra.mxu0 %v97
    %418 = vmatmul.f32.gmra.mxu0 %v140
    %v419 = vpop.f32.mrf.mxu0
    %v420 = vadd.f32 0.0, %v419
    %421 = vdwg.mxu0
    %422 = vmatpush.msra.mxu0 0.0
    %423 = vmatpush.msra.mxu0 0.0
    %424 = vmatpush.msra.mxu0 0.0
    %425 = vmatpush.msra.mxu0 0.0
    %426 = vmatpush.msra.mxu0 0.0
    %427 = vmatpush.msra.mxu0 0.0
    %428 = vmatpush.msra.mxu0 0.0
    %429 = vmatpush.msra.mxu0 0.0
    %430 = vmatpush.msra.mxu0 0.0
    %431 = vmatpush.msra.mxu0 0.0
    %432 = vmatpush.msra.mxu0 0.0
    %433 = vmatpush.msra.mxu0 0.0
    %434 = vmatpush.msra.mxu0 0.0
    %435 = vmatpush.msra.mxu0 %v134
    %436 = vmatpush.msra.mxu0 %v116
    %437 = vmatpush.msra.mxu0 %v98
    %438 = vmatmul.f32.gmra.mxu0 %v140
    %v439 = vpop.f32.mrf.mxu0
    %v440 = vadd.f32 0.0, %v439
    %441 = vdwg.mxu0
    %442 = vmatpush.msra.mxu0 0.0
    %443 = vmatpush.msra.mxu0 0.0
    %444 = vmatpush.msra.mxu0 0.0
    %445 = vmatpush.msra.mxu0 0.0
    %446 = vmatpush.msra.mxu0 0.0
    %447 = vmatpush.msra.mxu0 0.0
    %448 = vmatpush.msra.mxu0 0.0
    %449 = vmatpush.msra.mxu0 0.0
    %450 = vmatpush.msra.mxu0 0.0
    %451 = vmatpush.msra.mxu0 0.0
    %452 = vmatpush.msra.mxu0 0.0
    %453 = vmatpush.msra.mxu0 0.0
    %454 = vmatpush.msra.mxu0 0.0
    %455 = vmatpush.msra.mxu0 %v135
    %456 = vmatpush.msra.mxu0 %v117
    %457 = vmatpush.msra.mxu0 %v99
    %458 = vmatmul.f32.gmra.mxu0 %v140
    %v459 = vpop.f32.mrf.mxu0
    %v460 = vadd.f32 0.0, %v459
    %461 = vdwg.mxu0
    %462 = vmatpush.msra.mxu0 0.0
    %463 = vmatpush.msra.mxu0 0.0
    %464 = vmatpush.msra.mxu0 0.0
    %465 = vmatpush.msra.mxu0 0.0
    %466 = vmatpush.msra.mxu0 0.0
    %467 = vmatpush.msra.mxu0 0.0
    %468 = vmatpush.msra.mxu0 0.0
    %469 = vmatpush.msra.mxu0 0.0
    %470 = vmatpush.msra.mxu0 0.0
    %471 = vmatpush.msra.mxu0 0.0
    %472 = vmatpush.msra.mxu0 0.0
    %473 = vmatpush.msra.mxu0 0.0
    %474 = vmatpush.msra.mxu0 0.0
    %475 = vmatpush.msra.mxu0 %v136
    %476 = vmatpush.msra.mxu0 %v118
    %477 = vmatpush.msra.mxu0 %v100
    %478 = vmatmul.f32.gmra.mxu0 %v140
    %v479 = vpop.f32.mrf.mxu0
    %v480 = vadd.f32 0.0, %v479
    %481 = vdwg.mxu0
    %482 = vmatpush.msra.mxu0 0.0
    %483 = vmatpush.msra.mxu0 0.0
    %484 = vmatpush.msra.mxu0 0.0
    %485 = vmatpush.msra.mxu0 0.0
    %486 = vmatpush.msra.mxu0 0.0
    %487 = vmatpush.msra.mxu0 0.0
    %488 = vmatpush.msra.mxu0 0.0
    %489 = vmatpush.msra.mxu0 0.0
    %490 = vmatpush.msra.mxu0 0.0
    %491 = vmatpush.msra.mxu0 0.0
    %492 = vmatpush.msra.mxu0 0.0
    %493 = vmatpush.msra.mxu0 0.0
    %494 = vmatpush.msra.mxu0 0.0
    %495 = vmatpush.msra.mxu0 %v137
    %496 = vmatpush.msra.mxu0 %v119
    %497 = vmatpush.msra.mxu0 %v101
    %498 = vmatmul.f32.gmra.mxu0 %v140
    %v499 = vpop.f32.mrf.mxu0
    %v500 = vadd.f32 0.0, %v499
    %501 = vdwg.mxu0
    %v502 = vld [vmem:[%s2] sm:$0x7]
    %v503 = vld [vmem:[%s4] sm:$0x7]
    %v504 = vld [vmem:[#allocation5] sm:$0xff]
    %v505 = vld [vmem:[#allocation5 + $0x8] sm:$0xff]
    %v506 = vld [vmem:[#allocation5 + $0x10] sm:$0xff]
    %v507 = vld [vmem:[#allocation5 + $0x18] sm:$0xff]
    %v508 = vld [vmem:[#allocation5 + $0x20] sm:$0xff]
    %v509 = vld [vmem:[#allocation5 + $0x28] sm:$0xff]
    %v510 = vld [vmem:[#allocation5 + $0x30] sm:$0xff]
    %v511 = vld [vmem:[#allocation5 + $0x38] sm:$0xff]
    %v512 = vld [vmem:[#allocation5 + $0x40] sm:$0xff]
    %v513 = vld [vmem:[#allocation5 + $0x48] sm:$0xff]
    %v514 = vld [vmem:[#allocation5 + $0x50] sm:$0xff]
    %v515 = vld [vmem:[#allocation5 + $0x58] sm:$0xff]
    %v516 = vld [vmem:[#allocation5 + $0x60] sm:$0xff]
    %v517 = vld [vmem:[#allocation5 + $0x68] sm:$0xff]
    %v518 = vld [vmem:[#allocation5 + $0x70] sm:$0xff]
    %v519 = vld [vmem:[#allocation5 + $0x78] sm:$0xff]
    %v520 = vld [vmem:[#allocation5 + $0x80] sm:$0xff]
    %v521 = vld [vmem:[#allocation5 + $0x88] sm:$0xff]
    %v522 = vld [vmem:[#allocation5 + $0x90] sm:$0xff]
    %v523 = vld [vmem:[#allocation5 + $0x98] sm:$0xff]
    %v524 = vld [vmem:[#allocation5 + $0xa0] sm:$0xff]
    %v525 = vld [vmem:[#allocation5 + $0xa8] sm:$0xff]
    %v526 = vld [vmem:[#allocation5 + $0xb0] sm:$0xff]
    %v527 = vld [vmem:[#allocation5 + $0xb8] sm:$0xff]
    %v528 = vld [vmem:[#allocation5 + $0xc0] sm:$0xff]
    %v529 = vld [vmem:[#allocation5 + $0xc8] sm:$0xff]
    %v530 = vld [vmem:[#allocation5 + $0xd0] sm:$0xff]
    %v531 = vld [vmem:[#allocation5 + $0xd8] sm:$0xff]
    %v532 = vld [vmem:[#allocation5 + $0xe0] sm:$0xff]
    %v533 = vld [vmem:[#allocation5 + $0xe8] sm:$0xff]
    %v534 = vld [vmem:[#allocation5 + $0xf0] sm:$0xff]
    %v535 = vld [vmem:[#allocation5 + $0xf8] sm:$0xff]
    %v536 = vld [vmem:[#allocation5 + $0x100] sm:$0xff]
    %v537 = vld [vmem:[#allocation5 + $0x108] sm:$0xff]
    %v538 = vld [vmem:[#allocation5 + $0x110] sm:$0xff]
    %v539 = vld [vmem:[#allocation5 + $0x118] sm:$0xff]
    %v540 = vld [vmem:[#allocation5 + $0x120] sm:$0xff]
    %v541 = vld [vmem:[#allocation5 + $0x128] sm:$0xff]
    %v542 = vld [vmem:[#allocation5 + $0x130] sm:$0xff]
    %v543 = vld [vmem:[#allocation5 + $0x138] sm:$0xff]
    %v544 = vld [vmem:[#allocation5 + $0x140] sm:$0xff]
    %v545 = vld [vmem:[#allocation5 + $0x148] sm:$0xff]
    %v546 = vld [vmem:[#allocation5 + $0x150] sm:$0xff]
    %v547 = vld [vmem:[#allocation5 + $0x158] sm:$0xff]
    %v548 = vld [vmem:[#allocation5 + $0x160] sm:$0xff]
    %v549 = vld [vmem:[#allocation5 + $0x168] sm:$0xff]
    %v550 = vld [vmem:[#allocation5 + $0x170] sm:$0xff]
    %v551 = vld [vmem:[#allocation5 + $0x178] sm:$0xff]
    %v553 = vperm.slane %v502, 0
    %v554 = vperm.slane %v502, 1
    %v555 = vperm.slane %v502, 2
    %v559 = vadd.f32 %v160, %v553
    %v560 = vadd.f32 %v180, %v554
    %v561 = vadd.f32 %v200, %v555
    %v563 = vperm.slane %v503, 0
    %v564 = vperm.slane %v503, 1
    %v565 = vperm.slane %v503, 2
    %569 = vmatpush.msra.mxu0 %v549
    %570 = vmatpush.msra.mxu0 %v546
    %571 = vmatpush.msra.mxu0 %v543
    %572 = vmatpush.msra.mxu0 %v540
    %573 = vmatpush.msra.mxu0 %v537
    %574 = vmatpush.msra.mxu0 %v534
    %575 = vmatpush.msra.mxu0 %v531
    %576 = vmatpush.msra.mxu0 %v528
    %577 = vmatpush.msra.mxu0 %v525
    %578 = vmatpush.msra.mxu0 %v522
    %579 = vmatpush.msra.mxu0 %v519
    %580 = vmatpush.msra.mxu0 %v516
    %581 = vmatpush.msra.mxu0 %v513
    %582 = vmatpush.msra.mxu0 %v510
    %583 = vmatpush.msra.mxu0 %v507
    %584 = vmatpush.msra.mxu0 %v504
    %585 = vmatmul.f32.gmra.mxu0 0.0
    %v586 = vpop.f32.mrf.mxu0
    %v587 = vadd.f32 %v563, %v586
    %588 = vdwg.mxu0
    %589 = vmatpush.msra.mxu0 %v550
    %590 = vmatpush.msra.mxu0 %v547
    %591 = vmatpush.msra.mxu0 %v544
    %592 = vmatpush.msra.mxu0 %v541
    %593 = vmatpush.msra.mxu0 %v538
    %594 = vmatpush.msra.mxu0 %v535
    %595 = vmatpush.msra.mxu0 %v532
    %596 = vmatpush.msra.mxu0 %v529
    %597 = vmatpush.msra.mxu0 %v526
    %598 = vmatpush.msra.mxu0 %v523
    %599 = vmatpush.msra.mxu0 %v520
    %600 = vmatpush.msra.mxu0 %v517
    %601 = vmatpush.msra.mxu0 %v514
    %602 = vmatpush.msra.mxu0 %v511
    %603 = vmatpush.msra.mxu0 %v508
    %604 = vmatpush.msra.mxu0 %v505
    %605 = vmatmul.f32.gmra.mxu0 0.0
    %v606 = vpop.f32.mrf.mxu0
    %v607 = vadd.f32 %v564, %v606
    %608 = vdwg.mxu0
    %609 = vmatpush.msra.mxu0 %v551
    %610 = vmatpush.msra.mxu0 %v548
    %611 = vmatpush.msra.mxu0 %v545
    %612 = vmatpush.msra.mxu0 %v542
    %613 = vmatpush.msra.mxu0 %v539
    %614 = vmatpush.msra.mxu0 %v536
    %615 = vmatpush.msra.mxu0 %v533
    %616 = vmatpush.msra.mxu0 %v530
    %617 = vmatpush.msra.mxu0 %v527
    %618 = vmatpush.msra.mxu0 %v524
    %619 = vmatpush.msra.mxu0 %v521
    %620 = vmatpush.msra.mxu0 %v518
    %621 = vmatpush.msra.mxu0 %v515
    %622 = vmatpush.msra.mxu0 %v512
    %623 = vmatpush.msra.mxu0 %v509
    %624 = vmatpush.msra.mxu0 %v506
    %625 = vmatmul.f32.gmra.mxu0 0.0
    %v626 = vpop.f32.mrf.mxu0
    %v627 = vadd.f32 %v565, %v626
    %628 = vdwg.mxu0
    %v629 = vadd.f32 %v559, %v587
    %v630 = vxor.u32 %v629, 2147483648
    %v631 = vmul.f32 %v630, 1.442695
    %v632 = vpow.pop %v631
    %v633 = vadd.f32 %v632, 1.0
    %v634 = vrcp.pop %v633
    %v635 = vmul.f32 %v633, %v634
    %v636 = vsub.f32 1.0, %v635
    %v637 = vmul.f32 %v634, %v636
    %v638 = vadd.f32 %v634, %v637
    %vm639 = vweird.f32 %v633
    %vm640 = vweird.f32 %v634
    %vm641 = vmor %vm639, %vm640
    %v642 = vsel %vm641, %v634, %v638
    %v643 = vand.u32 2147483647, %v633
    %vm644 = vcmp.eq.f32.partialorder %v643, 8.507059e+37
    %v645 = vand.u32 %v633, 2147483648
    %v646 = vor.u32 1.1754944e-38, %v645
    %v647 = vsel %vm644, %v646, %v642
    %v648 = vmul.f32 1.0, %v647
    %v649 = vadd.f32 %v560, %v607
    %v650 = vxor.u32 %v649, 2147483648
    %v651 = vmul.f32 %v650, 1.442695
    %v652 = vpow.pop %v651
    %v653 = vadd.f32 %v652, 1.0
    %v654 = vrcp.pop %v653
    %v655 = vmul.f32 %v653, %v654
    %v656 = vsub.f32 1.0, %v655
    %v657 = vmul.f32 %v654, %v656
    %v658 = vadd.f32 %v654, %v657
    %vm659 = vweird.f32 %v653
    %vm660 = vweird.f32 %v654
    %vm661 = vmor %vm659, %vm660
    %v662 = vsel %vm661, %v654, %v658
    %v663 = vand.u32 2147483647, %v653
    %vm664 = vcmp.eq.f32.partialorder %v663, 8.507059e+37
    %v665 = vand.u32 %v653, 2147483648
    %v666 = vor.u32 1.1754944e-38, %v665
    %v667 = vsel %vm664, %v666, %v662
    %v668 = vmul.f32 1.0, %v667
    %v669 = vmul.f32 %v648, %v627
    %v670 = vadd.f32 %v561, %v669
    %v671 = vtanh.pop %v670
    %v672 = vsub.f32 1.0, %v668
    %v673 = vmul.f32 %v672, %v671
    %v674 = vmul.f32 %v668, 0.0
    %v675 = vadd.f32 %v673, %v674
    %v676 = vadd.f32 %v220, %v553
    %v677 = vadd.f32 %v240, %v554
    %v678 = vadd.f32 %v260, %v555
    %679 = vmatpush.msra.mxu0 %v549
    %680 = vmatpush.msra.mxu0 %v546
    %681 = vmatpush.msra.mxu0 %v543
    %682 = vmatpush.msra.mxu0 %v540
    %683 = vmatpush.msra.mxu0 %v537
    %684 = vmatpush.msra.mxu0 %v534
    %685 = vmatpush.msra.mxu0 %v531
    %686 = vmatpush.msra.mxu0 %v528
    %687 = vmatpush.msra.mxu0 %v525
    %688 = vmatpush.msra.mxu0 %v522
    %689 = vmatpush.msra.mxu0 %v519
    %690 = vmatpush.msra.mxu0 %v516
    %691 = vmatpush.msra.mxu0 %v513
    %692 = vmatpush.msra.mxu0 %v510
    %693 = vmatpush.msra.mxu0 %v507
    %694 = vmatpush.msra.mxu0 %v504
    %695 = vmatmul.f32.gmra.mxu0 %v675
    %v696 = vpop.f32.mrf.mxu0
    %v697 = vadd.f32 %v563, %v696
    %698 = vdwg.mxu0
    %699 = vmatpush.msra.mxu0 %v550
    %700 = vmatpush.msra.mxu0 %v547
    %701 = vmatpush.msra.mxu0 %v544
    %702 = vmatpush.msra.mxu0 %v541
    %703 = vmatpush.msra.mxu0 %v538
    %704 = vmatpush.msra.mxu0 %v535
    %705 = vmatpush.msra.mxu0 %v532
    %706 = vmatpush.msra.mxu0 %v529
    %707 = vmatpush.msra.mxu0 %v526
    %708 = vmatpush.msra.mxu0 %v523
    %709 = vmatpush.msra.mxu0 %v520
    %710 = vmatpush.msra.mxu0 %v517
    %711 = vmatpush.msra.mxu0 %v514
    %712 = vmatpush.msra.mxu0 %v511
    %713 = vmatpush.msra.mxu0 %v508
    %714 = vmatpush.msra.mxu0 %v505
    %715 = vmatmul.f32.gmra.mxu0 %v675
    %v716 = vpop.f32.mrf.mxu0
    %v717 = vadd.f32 %v564, %v716
    %718 = vdwg.mxu0
    %719 = vmatpush.msra.mxu0 %v551
    %720 = vmatpush.msra.mxu0 %v548
    %721 = vmatpush.msra.mxu0 %v545
    %722 = vmatpush.msra.mxu0 %v542
    %723 = vmatpush.msra.mxu0 %v539
    %724 = vmatpush.msra.mxu0 %v536
    %725 = vmatpush.msra.mxu0 %v533
    %726 = vmatpush.msra.mxu0 %v530
    %727 = vmatpush.msra.mxu0 %v527
    %728 = vmatpush.msra.mxu0 %v524
    %729 = vmatpush.msra.mxu0 %v521
    %730 = vmatpush.msra.mxu0 %v518
    %731 = vmatpush.msra.mxu0 %v515
    %732 = vmatpush.msra.mxu0 %v512
    %733 = vmatpush.msra.mxu0 %v509
    %734 = vmatpush.msra.mxu0 %v506
    %735 = vmatmul.f32.gmra.mxu0 %v675
    %v736 = vpop.f32.mrf.mxu0
    %v737 = vadd.f32 %v565, %v736
    %738 = vdwg.mxu0
    %v739 = vadd.f32 %v676, %v697
    %v740 = vxor.u32 %v739, 2147483648
    %v741 = vmul.f32 %v740, 1.442695
    %v742 = vpow.pop %v741
    %v743 = vadd.f32 %v742, 1.0
    %v744 = vrcp.pop %v743
    %v745 = vmul.f32 %v743, %v744
    %v746 = vsub.f32 1.0, %v745
    %v747 = vmul.f32 %v744, %v746
    %v748 = vadd.f32 %v744, %v747
    %vm749 = vweird.f32 %v743
    %vm750 = vweird.f32 %v744
    %vm751 = vmor %vm749, %vm750
    %v752 = vsel %vm751, %v744, %v748
    %v753 = vand.u32 2147483647, %v743
    %vm754 = vcmp.eq.f32.partialorder %v753, 8.507059e+37
    %v755 = vand.u32 %v743, 2147483648
    %v756 = vor.u32 1.1754944e-38, %v755
    %v757 = vsel %vm754, %v756, %v752
    %v758 = vmul.f32 1.0, %v757
    %v759 = vadd.f32 %v677, %v717
    %v760 = vxor.u32 %v759, 2147483648
    %v761 = vmul.f32 %v760, 1.442695
    %v762 = vpow.pop %v761
    %v763 = vadd.f32 %v762, 1.0
    %v764 = vrcp.pop %v763
    %v765 = vmul.f32 %v763, %v764
    %v766 = vsub.f32 1.0, %v765
    %v767 = vmul.f32 %v764, %v766
    %v768 = vadd.f32 %v764, %v767
    %vm769 = vweird.f32 %v763
    %vm770 = vweird.f32 %v764
    %vm771 = vmor %vm769, %vm770
    %v772 = vsel %vm771, %v764, %v768
    %v773 = vand.u32 2147483647, %v763
    %vm774 = vcmp.eq.f32.partialorder %v773, 8.507059e+37
    %v775 = vand.u32 %v763, 2147483648
    %v776 = vor.u32 1.1754944e-38, %v775
    %v777 = vsel %vm774, %v776, %v772
    %v778 = vmul.f32 1.0, %v777
    %v779 = vmul.f32 %v758, %v737
    %v780 = vadd.f32 %v678, %v779
    %v781 = vtanh.pop %v780
    %v782 = vsub.f32 1.0, %v778
    %v783 = vmul.f32 %v782, %v781
    %v784 = vmul.f32 %v778, %v675
    %v785 = vadd.f32 %v783, %v784
    %v786 = vadd.f32 %v280, %v553
    %v787 = vadd.f32 %v300, %v554
    %v788 = vadd.f32 %v320, %v555
    %789 = vmatpush.msra.mxu0 %v549
    %790 = vmatpush.msra.mxu0 %v546
    %791 = vmatpush.msra.mxu0 %v543
    %792 = vmatpush.msra.mxu0 %v540
    %793 = vmatpush.msra.mxu0 %v537
    %794 = vmatpush.msra.mxu0 %v534
    %795 = vmatpush.msra.mxu0 %v531
    %796 = vmatpush.msra.mxu0 %v528
    %797 = vmatpush.msra.mxu0 %v525
    %798 = vmatpush.msra.mxu0 %v522
    %799 = vmatpush.msra.mxu0 %v519
    %800 = vmatpush.msra.mxu0 %v516
    %801 = vmatpush.msra.mxu0 %v513
    %802 = vmatpush.msra.mxu0 %v510
    %803 = vmatpush.msra.mxu0 %v507
    %804 = vmatpush.msra.mxu0 %v504
    %805 = vmatmul.f32.gmra.mxu0 %v785
    %v806 = vpop.f32.mrf.mxu0
    %v807 = vadd.f32 %v563, %v806
    %808 = vdwg.mxu0
    %809 = vmatpush.msra.mxu0 %v550
    %810 = vmatpush.msra.mxu0 %v547
    %811 = vmatpush.msra.mxu0 %v544
    %812 = vmatpush.msra.mxu0 %v541
    %813 = vmatpush.msra.mxu0 %v538
    %814 = vmatpush.msra.mxu0 %v535
    %815 = vmatpush.msra.mxu0 %v532
    %816 = vmatpush.msra.mxu0 %v529
    %817 = vmatpush.msra.mxu0 %v526
    %818 = vmatpush.msra.mxu0 %v523
    %819 = vmatpush.msra.mxu0 %v520
    %820 = vmatpush.msra.mxu0 %v517
    %821 = vmatpush.msra.mxu0 %v514
    %822 = vmatpush.msra.mxu0 %v511
    %823 = vmatpush.msra.mxu0 %v508
    %824 = vmatpush.msra.mxu0 %v505
    %825 = vmatmul.f32.gmra.mxu0 %v785
    %v826 = vpop.f32.mrf.mxu0
    %v827 = vadd.f32 %v564, %v826
    %828 = vdwg.mxu0
    %829 = vmatpush.msra.mxu0 %v551
    %830 = vmatpush.msra.mxu0 %v548
    %831 = vmatpush.msra.mxu0 %v545
    %832 = vmatpush.msra.mxu0 %v542
    %833 = vmatpush.msra.mxu0 %v539
    %834 = vmatpush.msra.mxu0 %v536
    %835 = vmatpush.msra.mxu0 %v533
    %836 = vmatpush.msra.mxu0 %v530
    %837 = vmatpush.msra.mxu0 %v527
    %838 = vmatpush.msra.mxu0 %v524
    %839 = vmatpush.msra.mxu0 %v521
    %840 = vmatpush.msra.mxu0 %v518
    %841 = vmatpush.msra.mxu0 %v515
    %842 = vmatpush.msra.mxu0 %v512
    %843 = vmatpush.msra.mxu0 %v509
    %844 = vmatpush.msra.mxu0 %v506
    %845 = vmatmul.f32.gmra.mxu0 %v785
    %v846 = vpop.f32.mrf.mxu0
    %v847 = vadd.f32 %v565, %v846
    %848 = vdwg.mxu0
    %v849 = vadd.f32 %v786, %v807
    %v850 = vxor.u32 %v849, 2147483648
    %v851 = vmul.f32 %v850, 1.442695
    %v852 = vpow.pop %v851
    %v853 = vadd.f32 %v852, 1.0
    %v854 = vrcp.pop %v853
    %v855 = vmul.f32 %v853, %v854
    %v856 = vsub.f32 1.0, %v855
    %v857 = vmul.f32 %v854, %v856
    %v858 = vadd.f32 %v854, %v857
    %vm859 = vweird.f32 %v853
    %vm860 = vweird.f32 %v854
    %vm861 = vmor %vm859, %vm860
    %v862 = vsel %vm861, %v854, %v858
    %v863 = vand.u32 2147483647, %v853
    %vm864 = vcmp.eq.f32.partialorder %v863, 8.507059e+37
    %v865 = vand.u32 %v853, 2147483648
    %v866 = vor.u32 1.1754944e-38, %v865
    %v867 = vsel %vm864, %v866, %v862
    %v868 = vmul.f32 1.0, %v867
    %v869 = vadd.f32 %v787, %v827
    %v870 = vxor.u32 %v869, 2147483648
    %v871 = vmul.f32 %v870, 1.442695
    %v872 = vpow.pop %v871
    %v873 = vadd.f32 %v872, 1.0
    %v874 = vrcp.pop %v873
    %v875 = vmul.f32 %v873, %v874
    %v876 = vsub.f32 1.0, %v875
    %v877 = vmul.f32 %v874, %v876
    %v878 = vadd.f32 %v874, %v877
    %vm879 = vweird.f32 %v873
    %vm880 = vweird.f32 %v874
    %vm881 = vmor %vm879, %vm880
    %v882 = vsel %vm881, %v874, %v878
    %v883 = vand.u32 2147483647, %v873
    %vm884 = vcmp.eq.f32.partialorder %v883, 8.507059e+37
    %v885 = vand.u32 %v873, 2147483648
    %v886 = vor.u32 1.1754944e-38, %v885
    %v887 = vsel %vm884, %v886, %v882
    %v888 = vmul.f32 1.0, %v887
    %v889 = vmul.f32 %v868, %v847
    %v890 = vadd.f32 %v788, %v889
    %v891 = vtanh.pop %v890
    %v892 = vsub.f32 1.0, %v888
    %v893 = vmul.f32 %v892, %v891
    %v894 = vmul.f32 %v888, %v785
    %v895 = vadd.f32 %v893, %v894
    %v896 = vadd.f32 %v340, %v553
    %v897 = vadd.f32 %v360, %v554
    %v898 = vadd.f32 %v380, %v555
    %899 = vmatpush.msra.mxu0 %v549
    %900 = vmatpush.msra.mxu0 %v546
    %901 = vmatpush.msra.mxu0 %v543
    %902 = vmatpush.msra.mxu0 %v540
    %903 = vmatpush.msra.mxu0 %v537
    %904 = vmatpush.msra.mxu0 %v534
    %905 = vmatpush.msra.mxu0 %v531
    %906 = vmatpush.msra.mxu0 %v528
    %907 = vmatpush.msra.mxu0 %v525
    %908 = vmatpush.msra.mxu0 %v522
    %909 = vmatpush.msra.mxu0 %v519
    %910 = vmatpush.msra.mxu0 %v516
    %911 = vmatpush.msra.mxu0 %v513
    %912 = vmatpush.msra.mxu0 %v510
    %913 = vmatpush.msra.mxu0 %v507
    %914 = vmatpush.msra.mxu0 %v504
    %915 = vmatmul.f32.gmra.mxu0 %v895
    %v916 = vpop.f32.mrf.mxu0
    %v917 = vadd.f32 %v563, %v916
    %918 = vdwg.mxu0
    %919 = vmatpush.msra.mxu0 %v550
    %920 = vmatpush.msra.mxu0 %v547
    %921 = vmatpush.msra.mxu0 %v544
    %922 = vmatpush.msra.mxu0 %v541
    %923 = vmatpush.msra.mxu0 %v538
    %924 = vmatpush.msra.mxu0 %v535
    %925 = vmatpush.msra.mxu0 %v532
    %926 = vmatpush.msra.mxu0 %v529
    %927 = vmatpush.msra.mxu0 %v526
    %928 = vmatpush.msra.mxu0 %v523
    %929 = vmatpush.msra.mxu0 %v520
    %930 = vmatpush.msra.mxu0 %v517
    %931 = vmatpush.msra.mxu0 %v514
    %932 = vmatpush.msra.mxu0 %v511
    %933 = vmatpush.msra.mxu0 %v508
    %934 = vmatpush.msra.mxu0 %v505
    %935 = vmatmul.f32.gmra.mxu0 %v895
    %v936 = vpop.f32.mrf.mxu0
    %v937 = vadd.f32 %v564, %v936
    %938 = vdwg.mxu0
    %939 = vmatpush.msra.mxu0 %v551
    %940 = vmatpush.msra.mxu0 %v548
    %941 = vmatpush.msra.mxu0 %v545
    %942 = vmatpush.msra.mxu0 %v542
    %943 = vmatpush.msra.mxu0 %v539
    %944 = vmatpush.msra.mxu0 %v536
    %945 = vmatpush.msra.mxu0 %v533
    %946 = vmatpush.msra.mxu0 %v530
    %947 = vmatpush.msra.mxu0 %v527
    %948 = vmatpush.msra.mxu0 %v524
    %949 = vmatpush.msra.mxu0 %v521
    %950 = vmatpush.msra.mxu0 %v518
    %951 = vmatpush.msra.mxu0 %v515
    %952 = vmatpush.msra.mxu0 %v512
    %953 = vmatpush.msra.mxu0 %v509
    %954 = vmatpush.msra.mxu0 %v506
    %955 = vmatmul.f32.gmra.mxu0 %v895
    %v956 = vpop.f32.mrf.mxu0
    %v957 = vadd.f32 %v565, %v956
    %958 = vdwg.mxu0
    %v959 = vadd.f32 %v896, %v917
    %v960 = vxor.u32 %v959, 2147483648
    %v961 = vmul.f32 %v960, 1.442695
    %v962 = vpow.pop %v961
    %v963 = vadd.f32 %v962, 1.0
    %v964 = vrcp.pop %v963
    %v965 = vmul.f32 %v963, %v964
    %v966 = vsub.f32 1.0, %v965
    %v967 = vmul.f32 %v964, %v966
    %v968 = vadd.f32 %v964, %v967
    %vm969 = vweird.f32 %v963
    %vm970 = vweird.f32 %v964
    %vm971 = vmor %vm969, %vm970
    %v972 = vsel %vm971, %v964, %v968
    %v973 = vand.u32 2147483647, %v963
    %vm974 = vcmp.eq.f32.partialorder %v973, 8.507059e+37
    %v975 = vand.u32 %v963, 2147483648
    %v976 = vor.u32 1.1754944e-38, %v975
    %v977 = vsel %vm974, %v976, %v972
    %v978 = vmul.f32 1.0, %v977
    %v979 = vadd.f32 %v897, %v937
    %v980 = vxor.u32 %v979, 2147483648
    %v981 = vmul.f32 %v980, 1.442695
    %v982 = vpow.pop %v981
    %v983 = vadd.f32 %v982, 1.0
    %v984 = vrcp.pop %v983
    %v985 = vmul.f32 %v983, %v984
    %v986 = vsub.f32 1.0, %v985
    %v987 = vmul.f32 %v984, %v986
    %v988 = vadd.f32 %v984, %v987
    %vm989 = vweird.f32 %v983
    %vm990 = vweird.f32 %v984
    %vm991 = vmor %vm989, %vm990
    %v992 = vsel %vm991, %v984, %v988
    %v993 = vand.u32 2147483647, %v983
    %vm994 = vcmp.eq.f32.partialorder %v993, 8.507059e+37
    %v995 = vand.u32 %v983, 2147483648
    %v996 = vor.u32 1.1754944e-38, %v995
    %v997 = vsel %vm994, %v996, %v992
    %v998 = vmul.f32 1.0, %v997
    %v999 = vmul.f32 %v978, %v957
    %v1000 = vadd.f32 %v898, %v999
    %v1001 = vtanh.pop %v1000
    %v1002 = vsub.f32 1.0, %v998
    %v1003 = vmul.f32 %v1002, %v1001
    %v1004 = vmul.f32 %v998, %v895
    %v1005 = vadd.f32 %v1003, %v1004
    %v1006 = vadd.f32 %v400, %v553
    %v1007 = vadd.f32 %v420, %v554
    %v1008 = vadd.f32 %v440, %v555
    %1009 = vmatpush.msra.mxu0 %v549
    %1010 = vmatpush.msra.mxu0 %v546
    %1011 = vmatpush.msra.mxu0 %v543
    %1012 = vmatpush.msra.mxu0 %v540
    %1013 = vmatpush.msra.mxu0 %v537
    %1014 = vmatpush.msra.mxu0 %v534
    %1015 = vmatpush.msra.mxu0 %v531
    %1016 = vmatpush.msra.mxu0 %v528
    %1017 = vmatpush.msra.mxu0 %v525
    %1018 = vmatpush.msra.mxu0 %v522
    %1019 = vmatpush.msra.mxu0 %v519
    %1020 = vmatpush.msra.mxu0 %v516
    %1021 = vmatpush.msra.mxu0 %v513
    %1022 = vmatpush.msra.mxu0 %v510
    %1023 = vmatpush.msra.mxu0 %v507
    %1024 = vmatpush.msra.mxu0 %v504
    %1025 = vmatmul.f32.gmra.mxu0 %v1005
    %v1026 = vpop.f32.mrf.mxu0
    %v1027 = vadd.f32 %v563, %v1026
    %1028 = vdwg.mxu0
    %1029 = vmatpush.msra.mxu0 %v550
    %1030 = vmatpush.msra.mxu0 %v547
    %1031 = vmatpush.msra.mxu0 %v544
    %1032 = vmatpush.msra.mxu0 %v541
    %1033 = vmatpush.msra.mxu0 %v538
    %1034 = vmatpush.msra.mxu0 %v535
    %1035 = vmatpush.msra.mxu0 %v532
    %1036 = vmatpush.msra.mxu0 %v529
    %1037 = vmatpush.msra.mxu0 %v526
    %1038 = vmatpush.msra.mxu0 %v523
    %1039 = vmatpush.msra.mxu0 %v520
    %1040 = vmatpush.msra.mxu0 %v517
    %1041 = vmatpush.msra.mxu0 %v514
    %1042 = vmatpush.msra.mxu0 %v511
    %1043 = vmatpush.msra.mxu0 %v508
    %1044 = vmatpush.msra.mxu0 %v505
    %1045 = vmatmul.f32.gmra.mxu0 %v1005
    %v1046 = vpop.f32.mrf.mxu0
    %v1047 = vadd.f32 %v564, %v1046
    %1048 = vdwg.mxu0
    %1049 = vmatpush.msra.mxu0 %v551
    %1050 = vmatpush.msra.mxu0 %v548
    %1051 = vmatpush.msra.mxu0 %v545
    %1052 = vmatpush.msra.mxu0 %v542
    %1053 = vmatpush.msra.mxu0 %v539
    %1054 = vmatpush.msra.mxu0 %v536
    %1055 = vmatpush.msra.mxu0 %v533
    %1056 = vmatpush.msra.mxu0 %v530
    %1057 = vmatpush.msra.mxu0 %v527
    %1058 = vmatpush.msra.mxu0 %v524
    %1059 = vmatpush.msra.mxu0 %v521
    %1060 = vmatpush.msra.mxu0 %v518
    %1061 = vmatpush.msra.mxu0 %v515
    %1062 = vmatpush.msra.mxu0 %v512
    %1063 = vmatpush.msra.mxu0 %v509
    %1064 = vmatpush.msra.mxu0 %v506
    %1065 = vmatmul.f32.gmra.mxu0 %v1005
    %v1066 = vpop.f32.mrf.mxu0
    %v1067 = vadd.f32 %v565, %v1066
    %1068 = vdwg.mxu0
    %v1069 = vadd.f32 %v1006, %v1027
    %v1070 = vxor.u32 %v1069, 2147483648
    %v1071 = vmul.f32 %v1070, 1.442695
    %v1072 = vpow.pop %v1071
    %v1073 = vadd.f32 %v1072, 1.0
    %v1074 = vrcp.pop %v1073
    %v1075 = vmul.f32 %v1073, %v1074
    %v1076 = vsub.f32 1.0, %v1075
    %v1077 = vmul.f32 %v1074, %v1076
    %v1078 = vadd.f32 %v1074, %v1077
    %vm1079 = vweird.f32 %v1073
    %vm1080 = vweird.f32 %v1074
    %vm1081 = vmor %vm1079, %vm1080
    %v1082 = vsel %vm1081, %v1074, %v1078
    %v1083 = vand.u32 2147483647, %v1073
    %vm1084 = vcmp.eq.f32.partialorder %v1083, 8.507059e+37
    %v1085 = vand.u32 %v1073, 2147483648
    %v1086 = vor.u32 1.1754944e-38, %v1085
    %v1087 = vsel %vm1084, %v1086, %v1082
    %v1088 = vmul.f32 1.0, %v1087
    %v1089 = vadd.f32 %v1007, %v1047
    %v1090 = vxor.u32 %v1089, 2147483648
    %v1091 = vmul.f32 %v1090, 1.442695
    %v1092 = vpow.pop %v1091
    %v1093 = vadd.f32 %v1092, 1.0
    %v1094 = vrcp.pop %v1093
    %v1095 = vmul.f32 %v1093, %v1094
    %v1096 = vsub.f32 1.0, %v1095
    %v1097 = vmul.f32 %v1094, %v1096
    %v1098 = vadd.f32 %v1094, %v1097
    %vm1099 = vweird.f32 %v1093
    %vm1100 = vweird.f32 %v1094
    %vm1101 = vmor %vm1099, %vm1100
    %v1102 = vsel %vm1101, %v1094, %v1098
    %v1103 = vand.u32 2147483647, %v1093
    %vm1104 = vcmp.eq.f32.partialorder %v1103, 8.507059e+37
    %v1105 = vand.u32 %v1093, 2147483648
    %v1106 = vor.u32 1.1754944e-38, %v1105
    %v1107 = vsel %vm1104, %v1106, %v1102
    %v1108 = vmul.f32 1.0, %v1107
    %v1109 = vmul.f32 %v1088, %v1067
    %v1110 = vadd.f32 %v1008, %v1109
    %v1111 = vtanh.pop %v1110
    %v1112 = vsub.f32 1.0, %v1108
    %v1113 = vmul.f32 %v1112, %v1111
    %v1114 = vmul.f32 %v1108, %v1005
    %v1115 = vadd.f32 %v1113, %v1114
    %v1116 = vadd.f32 %v460, %v553
    %v1117 = vadd.f32 %v480, %v554
    %v1118 = vadd.f32 %v500, %v555
    %1119 = vmatpush.msra.mxu0 %v549
    %1120 = vmatpush.msra.mxu0 %v546
    %1121 = vmatpush.msra.mxu0 %v543
    %1122 = vmatpush.msra.mxu0 %v540
    %1123 = vmatpush.msra.mxu0 %v537
    %1124 = vmatpush.msra.mxu0 %v534
    %1125 = vmatpush.msra.mxu0 %v531
    %1126 = vmatpush.msra.mxu0 %v528
    %1127 = vmatpush.msra.mxu0 %v525
    %1128 = vmatpush.msra.mxu0 %v522
    %1129 = vmatpush.msra.mxu0 %v519
    %1130 = vmatpush.msra.mxu0 %v516
    %1131 = vmatpush.msra.mxu0 %v513
    %1132 = vmatpush.msra.mxu0 %v510
    %1133 = vmatpush.msra.mxu0 %v507
    %1134 = vmatpush.msra.mxu0 %v504
    %1135 = vmatmul.f32.gmra.mxu0 %v1115
    %v1136 = vpop.f32.mrf.mxu0
    %v1137 = vadd.f32 %v563, %v1136
    %1138 = vdwg.mxu0
    %1139 = vmatpush.msra.mxu0 %v550
    %1140 = vmatpush.msra.mxu0 %v547
    %1141 = vmatpush.msra.mxu0 %v544
    %1142 = vmatpush.msra.mxu0 %v541
    %1143 = vmatpush.msra.mxu0 %v538
    %1144 = vmatpush.msra.mxu0 %v535
    %1145 = vmatpush.msra.mxu0 %v532
    %1146 = vmatpush.msra.mxu0 %v529
    %1147 = vmatpush.msra.mxu0 %v526
    %1148 = vmatpush.msra.mxu0 %v523
    %1149 = vmatpush.msra.mxu0 %v520
    %1150 = vmatpush.msra.mxu0 %v517
    %1151 = vmatpush.msra.mxu0 %v514
    %1152 = vmatpush.msra.mxu0 %v511
    %1153 = vmatpush.msra.mxu0 %v508
    %1154 = vmatpush.msra.mxu0 %v505
    %1155 = vmatmul.f32.gmra.mxu0 %v1115
    %v1156 = vpop.f32.mrf.mxu0
    %v1157 = vadd.f32 %v564, %v1156
    %1158 = vdwg.mxu0
    %1159 = vmatpush.msra.mxu0 %v551
    %1160 = vmatpush.msra.mxu0 %v548
    %1161 = vmatpush.msra.mxu0 %v545
    %1162 = vmatpush.msra.mxu0 %v542
    %1163 = vmatpush.msra.mxu0 %v539
    %1164 = vmatpush.msra.mxu0 %v536
    %1165 = vmatpush.msra.mxu0 %v533
    %1166 = vmatpush.msra.mxu0 %v530
    %1167 = vmatpush.msra.mxu0 %v527
    %1168 = vmatpush.msra.mxu0 %v524
    %1169 = vmatpush.msra.mxu0 %v521
    %1170 = vmatpush.msra.mxu0 %v518
    %1171 = vmatpush.msra.mxu0 %v515
    %1172 = vmatpush.msra.mxu0 %v512
    %1173 = vmatpush.msra.mxu0 %v509
    %1174 = vmatpush.msra.mxu0 %v506
    %1175 = vmatmul.f32.gmra.mxu0 %v1115
    %v1176 = vpop.f32.mrf.mxu0
    %v1177 = vadd.f32 %v565, %v1176
    %1178 = vdwg.mxu0
    %v1179 = vadd.f32 %v1116, %v1137
    %v1180 = vxor.u32 %v1179, 2147483648
    %v1181 = vmul.f32 %v1180, 1.442695
    %v1182 = vpow.pop %v1181
    %v1183 = vadd.f32 %v1182, 1.0
    %v1184 = vrcp.pop %v1183
    %v1185 = vmul.f32 %v1183, %v1184
    %v1186 = vsub.f32 1.0, %v1185
    %v1187 = vmul.f32 %v1184, %v1186
    %v1188 = vadd.f32 %v1184, %v1187
    %vm1189 = vweird.f32 %v1183
    %vm1190 = vweird.f32 %v1184
    %vm1191 = vmor %vm1189, %vm1190
    %v1192 = vsel %vm1191, %v1184, %v1188
    %v1193 = vand.u32 2147483647, %v1183
    %vm1194 = vcmp.eq.f32.partialorder %v1193, 8.507059e+37
    %v1195 = vand.u32 %v1183, 2147483648
    %v1196 = vor.u32 1.1754944e-38, %v1195
    %v1197 = vsel %vm1194, %v1196, %v1192
    %v1198 = vmul.f32 1.0, %v1197
    %v1199 = vadd.f32 %v1117, %v1157
    %v1200 = vxor.u32 %v1199, 2147483648
    %v1201 = vmul.f32 %v1200, 1.442695
    %v1202 = vpow.pop %v1201
    %v1203 = vadd.f32 %v1202, 1.0
    %v1204 = vrcp.pop %v1203
    %v1205 = vmul.f32 %v1203, %v1204
    %v1206 = vsub.f32 1.0, %v1205
    %v1207 = vmul.f32 %v1204, %v1206
    %v1208 = vadd.f32 %v1204, %v1207
    %vm1209 = vweird.f32 %v1203
    %vm1210 = vweird.f32 %v1204
    %vm1211 = vmor %vm1209, %vm1210
    %v1212 = vsel %vm1211, %v1204, %v1208
    %v1213 = vand.u32 2147483647, %v1203
    %vm1214 = vcmp.eq.f32.partialorder %v1213, 8.507059e+37
    %v1215 = vand.u32 %v1203, 2147483648
    %v1216 = vor.u32 1.1754944e-38, %v1215
    %v1217 = vsel %vm1214, %v1216, %v1212
    %v1218 = vmul.f32 1.0, %v1217
    %v1219 = vmul.f32 %v1198, %v1177
    %v1220 = vadd.f32 %v1118, %v1219
    %v1221 = vtanh.pop %v1220
    %v1222 = vsub.f32 1.0, %v1218
    %v1223 = vmul.f32 %v1222, %v1221
    %v1224 = vmul.f32 %v1218, %v1115
    %v1225 = vadd.f32 %v1223, %v1224
    %v1226 = vld [vmem:[%s5] sm:$0xff]
    %v1227 = vld [vmem:[%s5 + $0x8] sm:$0xff]
    %v1228 = vld [vmem:[%s5 + $0x10] sm:$0xff]
    %v1229 = vld [vmem:[%s5 + $0x18] sm:$0xff]
    %v1230 = vld [vmem:[%s5 + $0x20] sm:$0xff]
    %v1231 = vld [vmem:[%s5 + $0x28] sm:$0xff]
    %v1232 = vld [vmem:[%s5 + $0x30] sm:$0xff]
    %v1233 = vld [vmem:[%s5 + $0x38] sm:$0xff]
    %v1234 = vld [vmem:[%s5 + $0x40] sm:$0xff]
    %v1235 = vld [vmem:[%s5 + $0x48] sm:$0xff]
    %v1236 = vld [vmem:[%s5 + $0x50] sm:$0xff]
    %v1237 = vld [vmem:[%s5 + $0x58] sm:$0xff]
    %v1238 = vld [vmem:[%s5 + $0x60] sm:$0xff]
    %v1239 = vld [vmem:[%s5 + $0x68] sm:$0xff]
    %v1240 = vld [vmem:[%s5 + $0x70] sm:$0xff]
    %v1241 = vld [vmem:[%s5 + $0x78] sm:$0xff]
    %v1242 = vld [vmem:[%s6] sm:$0x1]
    %v1244 = vperm.slane %v1242, 0
    %1246 = vmatpush.msra.mxu0 %v1241
    %1247 = vmatpush.msra.mxu0 %v1240
    %1248 = vmatpush.msra.mxu0 %v1239
    %1249 = vmatpush.msra.mxu0 %v1238
    %1250 = vmatpush.msra.mxu0 %v1237
    %1251 = vmatpush.msra.mxu0 %v1236
    %1252 = vmatpush.msra.mxu0 %v1235
    %1253 = vmatpush.msra.mxu0 %v1234
    %1254 = vmatpush.msra.mxu0 %v1233
    %1255 = vmatpush.msra.mxu0 %v1232
    %1256 = vmatpush.msra.mxu0 %v1231
    %1257 = vmatpush.msra.mxu0 %v1230
    %1258 = vmatpush.msra.mxu0 %v1229
    %1259 = vmatpush.msra.mxu0 %v1228
    %1260 = vmatpush.msra.mxu0 %v1227
    %1261 = vmatpush.msra.mxu0 %v1226
    %1262 = vmatmul.f32.gmra.mxu0 %v1225
    %v1263 = vpop.f32.mrf.mxu0
    %v1264 = vadd.f32 %v1244, %v1263
    %1265 = vdwg.mxu0
    %v1266 = vmax.f32 %v1264, 0.0
    %v1267 = vld [vmem:[%s7] sm:$0xff]
    %v1268 = vld [vmem:[%s7 + $0x8] sm:$0xff]
    %v1269 = vld [vmem:[%s7 + $0x10] sm:$0xff]
    %v1270 = vld [vmem:[%s7 + $0x18] sm:$0xff]
    %v1271 = vld [vmem:[%s7 + $0x20] sm:$0xff]
    %v1272 = vld [vmem:[%s7 + $0x28] sm:$0xff]
    %v1273 = vld [vmem:[%s7 + $0x30] sm:$0xff]
    %v1274 = vld [vmem:[%s7 + $0x38] sm:$0xff]
    %v1275 = vld [vmem:[%s8] sm:$0x1]
    %v1277 = vperm.slane %v1275, 0
    %vm1279 = vcmask 523264
    %v1281 = vsel %vm1279, %v1266, 0
    %1283 = vmatpush.msra.mxu0 0.0
    %1284 = vmatpush.msra.mxu0 0.0
    %1285 = vmatpush.msra.mxu0 0.0
    %1286 = vmatpush.msra.mxu0 0.0
    %1287 = vmatpush.msra.mxu0 0.0
    %1288 = vmatpush.msra.mxu0 0.0
    %1289 = vmatpush.msra.mxu0 0.0
    %1290 = vmatpush.msra.mxu0 0.0
    %1291 = vmatpush.msra.mxu0 %v1274
    %1292 = vmatpush.msra.mxu0 %v1273
    %1293 = vmatpush.msra.mxu0 %v1272
    %1294 = vmatpush.msra.mxu0 %v1271
    %1295 = vmatpush.msra.mxu0 %v1270
    %1296 = vmatpush.msra.mxu0 %v1269
    %1297 = vmatpush.msra.mxu0 %v1268
    %1298 = vmatpush.msra.mxu0 %v1267
    %1299 = vmatmul.f32.gmra.mxu0 %v1281
    %v1300 = vpop.f32.mrf.mxu0
    %v1301 = vadd.f32 %v1277, %v1300
    %1302 = vdwg.mxu0
    %1303 = vst [vmem:[#allocation7] sm:$0x3] %v1225
    %vm1304 = vcmask 82944
    %1305 = vst.msk [vmem:[#allocation7 + $0x2] sm:$0x3] %vm1304, %v1301
    %v1306 = vld [vmem:[%s9] sm:$0xff]
    %v1307 = vld [vmem:[%s9 + $0x8] sm:$0xff]
    %v1308 = vld [vmem:[%s9 + $0x10] sm:$0xff]
    %v1309 = vld [vmem:[%s9 + $0x18] sm:$0xff]
    %v1310 = vld [vmem:[%s9 + $0x20] sm:$0xff]
    %v1311 = vld [vmem:[%s9 + $0x28] sm:$0xff]
    %v1312 = vld [vmem:[%s9 + $0x30] sm:$0xff]
    %v1313 = vld [vmem:[%s9 + $0x38] sm:$0xff]
    %v1314 = vld [vmem:[%s9 + $0x40] sm:$0xff]
    %v1315 = vld [vmem:[%s9 + $0x48] sm:$0xff]
    %v1316 = vld [vmem:[%s9 + $0x50] sm:$0xff]
    %v1317 = vld [vmem:[%s9 + $0x58] sm:$0xff]
    %v1318 = vld [vmem:[%s9 + $0x60] sm:$0xff]
    %v1319 = vld [vmem:[%s9 + $0x68] sm:$0xff]
    %v1320 = vld [vmem:[%s9 + $0x70] sm:$0xff]
    %v1321 = vld [vmem:[%s9 + $0x78] sm:$0xff]
    %v1322 = vld [vmem:[%s10] sm:$0xff]
    %v1323 = vld [vmem:[%s10 + $0x8] sm:$0x7]
    %vm1324 = vcmask 89088
    %v1326 = vsel %vm1324, %v1301, 0
    %vm1328 = vcmask 1042432
    %v1330 = vsel %vm1328, %v1323, 0
    %1332 = vmatpush.msra.mxu0 0.0
    %1333 = vmatpush.msra.mxu0 0.0
    %1334 = vmatpush.msra.mxu0 0.0
    %1335 = vmatpush.msra.mxu0 0.0
    %1336 = vmatpush.msra.mxu0 0.0
    %1337 = vmatpush.msra.mxu0 0.0
    %1338 = vmatpush.msra.mxu0 0.0
    %1339 = vmatpush.msra.mxu0 0.0
    %1340 = vmatpush.msra.mxu0 0.0
    %1341 = vmatpush.msra.mxu0 0.0
    %1342 = vmatpush.msra.mxu0 0.0
    %1343 = vmatpush.msra.mxu0 0.0
    %1344 = vmatpush.msra.mxu0 0.0
    %1345 = vmatpush.msra.mxu0 0.0
    %1346 = vmatpush.msra.mxu0 %v1330
    %1347 = vmatpush.msra.mxu0 %v1322
    %1348 = vmatmul.f32.gmra.mxu0 %v1326
    %v1349 = vpop.f32.mrf.mxu0
    %v1350 = vadd.f32 0.0, %v1349
    %1351 = vdwg.mxu0
    %1352 = vmatpush.msra.mxu0 %v1321
    %1353 = vmatpush.msra.mxu0 %v1320
    %1354 = vmatpush.msra.mxu0 %v1319
    %1355 = vmatpush.msra.mxu0 %v1318
    %1356 = vmatpush.msra.mxu0 %v1317
    %1357 = vmatpush.msra.mxu0 %v1316
    %1358 = vmatpush.msra.mxu0 %v1315
    %1359 = vmatpush.msra.mxu0 %v1314
    %1360 = vmatpush.msra.mxu0 %v1313
    %1361 = vmatpush.msra.mxu0 %v1312
    %1362 = vmatpush.msra.mxu0 %v1311
    %1363 = vmatpush.msra.mxu0 %v1310
    %1364 = vmatpush.msra.mxu0 %v1309
    %1365 = vmatpush.msra.mxu0 %v1308
    %1366 = vmatpush.msra.mxu0 %v1307
    %1367 = vmatpush.msra.mxu0 %v1306
    %1368 = vmatmul.f32.gmra.mxu0 %v1225
    %v1369 = vpop.f32.mrf.mxu0
    %v1370 = vadd.f32 %v1350, %v1369
    %1371 = vdwg.mxu0
    %v1372 = vld [vmem:[%s11] sm:$0x1]
    %v1374 = vperm.slane %v1372, 0
    %v1376 = vadd.f32 %v1370, %v1374
    %v1377 = vmax.f32 %v1376, 0.0
    %v1378 = vld [vmem:[%s12] sm:$0xff]
    %v1379 = vld [vmem:[%s12 + $0x8] sm:$0xff]
    %v1380 = vld [vmem:[%s12 + $0x10] sm:$0xff]
    %v1381 = vld [vmem:[%s12 + $0x18] sm:$0xff]
    %v1382 = vld [vmem:[%s12 + $0x20] sm:$0xff]
    %v1383 = vld [vmem:[%s12 + $0x28] sm:$0xff]
    %v1384 = vld [vmem:[%s12 + $0x30] sm:$0xff]
    %v1385 = vld [vmem:[%s12 + $0x38] sm:$0xff]
    %v1386 = vld [vmem:[%s13] sm:$0x1]
    %v1388 = vperm.slane %v1386, 0
    %v1391 = vsel %vm1279, %v1377, 0
    %1393 = vmatpush.msra.mxu0 0.0
    %1394 = vmatpush.msra.mxu0 0.0
    %1395 = vmatpush.msra.mxu0 0.0
    %1396 = vmatpush.msra.mxu0 0.0
    %1397 = vmatpush.msra.mxu0 0.0
    %1398 = vmatpush.msra.mxu0 0.0
    %1399 = vmatpush.msra.mxu0 0.0
    %1400 = vmatpush.msra.mxu0 0.0
    %1401 = vmatpush.msra.mxu0 %v1385
    %1402 = vmatpush.msra.mxu0 %v1384
    %1403 = vmatpush.msra.mxu0 %v1383
    %1404 = vmatpush.msra.mxu0 %v1382
    %1405 = vmatpush.msra.mxu0 %v1381
    %1406 = vmatpush.msra.mxu0 %v1380
    %1407 = vmatpush.msra.mxu0 %v1379
    %1408 = vmatpush.msra.mxu0 %v1378
    %1409 = vmatmul.f32.gmra.mxu0 %v1391
    %v1410 = vpop.f32.mrf.mxu0
    %v1411 = vadd.f32 %v1388, %v1410
    %1412 = vdwg.mxu0
    %vm1413 = vcmask 9216
    %1414 = vst.msk [vmem:[#allocation8] sm:$0x3] %vm1413, %v1411
    // Predicated region
    $region66: #{tpu_custom_call.1} parent=1 // pred_check
      _
    $region67: #{tpu_custom_call.1} parent=1 // pred_check_branch
      %1416 = sbr.rel (0) target = $region69
    $region68: #{tpu_custom_call.1} parent=1 // pred_region
      %1418 = vsyncadd [#allocation4], 0
      %s1420 = sshll.u32 [#allocation7], 4
      %s1421 = int_to_ptr.vmem [resolvable:$true] %s1420
      %s1422 = sshll.u32 %s14, 4
      %s1423 = int_to_ptr.hbm [resolvable:$true] %s1422
      %1425 = dma.vmem_to_hbm [thread:$0]  %s1421, 64, %s1423, [#allocation4]
    $region69: #{tpu_custom_call.1} parent=1 // pred_fallthru
      _
    // Predicated region
    $region70: #{tpu_custom_call.1} parent=1 // pred_check
      _
    $region71: #{tpu_custom_call.1} parent=1 // pred_check_branch
      %1427 = sbr.rel (0) target = $region73
    $region72: #{tpu_custom_call.1} parent=1 // pred_region
      %1429 = vsyncadd [#allocation9], 0
      %s1431 = sshll.u32 [#allocation8], 4
      %s1432 = int_to_ptr.vmem [resolvable:$true] %s1431
      %s1433 = sshll.u32 %s15, 4
      %s1434 = int_to_ptr.hbm [resolvable:$true] %s1433
      %1436 = dma.vmem_to_hbm [thread:$0]  %s1432, 32, %s1434, [#allocation9]
    $region73: #{tpu_custom_call.1} parent=1 // pred_fallthru
      _
    // Predicated region
    $region74: #{tpu_custom_call.1} parent=1 // pred_check
      _
    $region75: #{tpu_custom_call.1} parent=1 // pred_check_branch
      %1438 = sbr.rel (0) target = $region77
    $region76: #{tpu_custom_call.1} parent=1 // pred_region
      %1440 = dma.done [#allocation4], 64
    $region77: #{tpu_custom_call.1} parent=1 // pred_fallthru
      _
    // Predicated region
    $region78: #{tpu_custom_call.1} parent=1 // pred_check
      _
    $region79: #{tpu_custom_call.1} parent=1 // pred_check_branch
      %1442 = sbr.rel (0) target = $region81
    $region80: #{tpu_custom_call.1} parent=1 // pred_region
      %1444 = dma.done [#allocation9], 32
    $region81: #{tpu_custom_call.1} parent=1 // pred_fallthru
      _
    %1445 = vsyncpa [#allocation3], 1
    %1446 = vsyncpa [#allocation6], 1
    %1447 = vsyncpa [#allocation4], 1
    %1448 = vsyncpa [#allocation9], 1

</llo_original>
